<compile_context>
chip_gen: v6e
topology: v6e:2x2x1
jax: 0.10.0
libtpu: 0.0.40
codegen_flags: <defaults>
</compile_context>

<pallas_src>
import math
from functools import partial

import jax
import jax.numpy as jnp
from jax import lax
from jax.experimental import pallas as pl
from jax.experimental.pallas import tpu as pltpu

EPS = 1e-6  # LayerNorm eps (norm_layer = partial(nn.LayerNorm, eps=1e-6))
_SQRT_2_OVER_PI = math.sqrt(2.0 / math.pi)


# ---------------------------------------------------------------------------
# small helpers
# ---------------------------------------------------------------------------
def _round_up(x, m):
    return (x + m - 1) // m * m


def _vmem_ceiling():
    # generation-aware ceiling; conservative 64 MiB (v7x physical) if the query
    # is unavailable in this environment.
    try:
        cap = int(pltpu.get_tpu_info().vmem_capacity_bytes)
        return max(int(cap * 0.9), 16 << 20)
    except Exception:
        return 64 << 20


def _vmem_limit(est_bytes):
    return int(min(max(est_bytes, 16 << 20), _vmem_ceiling()))


def _block_vmem_estimate(Np, C, Hm, H, emit_attn):
    bf, f4 = 2, 4
    C3 = 3 * C
    # double-buffered pipeline buffers (inputs + outputs)
    wbytes = ((2 * C * f4) * 2            # ln1, ln2
              + C * C3 * bf + C3 * f4     # wqkv, bqkv
              + C * C * bf + C * f4       # wp, bp
              + C * Hm * bf + Hm * f4     # w1, b1
              + Hm * C * bf + C * f4)     # w2, b2
    io = Np * C * f4 * 2 + (H * Np * Np * f4 if emit_attn else 0)
    pipelined = 2 * (wbytes + io)
    # live intermediates (single copies)
    inter = (Np * C * bf                  # xn
             + Np * C3 * f4               # qkv
             + 3 * Np * C * bf            # q, k, v head stacks (bf16)
             + 3 * H * Np * Np * f4       # s / e / a (f32)
             + H * Np * Np * bf           # a (bf16)
             + Np * C * (f4 + bf)         # ctx f32 + concat bf16
             + Np * C * f4                # attn_out
             + Np * C * bf                # xn2
             + Np * Hm * (f4 + bf)        # h1 f32 + bf16
             + Np * C * f4)               # h2
    return pipelined + inter + (2 << 20)


# ---------------------------------------------------------------------------
# in-kernel math helpers (only ops with guaranteed Mosaic lowerings)
# ---------------------------------------------------------------------------
def _gelu_tanh(x):
    # tanh-approximate GELU (EUP tanh + a few VALU ops); ~1e-3 deviation from
    # the exact erf GELU used by nn.GELU().
    return 0.5 * x * (1.0 + jnp.tanh(_SQRT_2_OVER_PI * (x + 0.044715 * x * x * x)))


def _layernorm(x, gamma, beta):
    mu = jnp.mean(x, axis=-1, keepdims=True)
    var = jnp.mean(jnp.square(x - mu), axis=-1, keepdims=True)
    return (x - mu) * lax.rsqrt(var + EPS) * gamma + beta


# ---------------------------------------------------------------------------
# fused transformer-stack kernel: grid = (B, depth)
# ---------------------------------------------------------------------------
def _blocks_kernel(x_ref, ln1_ref, wqkv_ref, bqkv_ref, wp_ref, bp_ref,
                   ln2_ref, w1_ref, b1_ref, w2_ref, b2_ref,
                   o_ref, attn_ref=None, *, num_heads, n_valid):
    d = pl.program_id(1)

    # residual stream is carried in the output block (same block index for all
    # d, so it stays resident in VMEM across the whole depth loop).
    @pl.when(d == 0)
    def _():
        o_ref[0] = x_ref[0]

    x = o_ref[0]                                   # (Np, C) f32 residual
    Np, C = x.shape
    H = num_heads
    hd = C // H

    # ---------------- attention ----------------
    ln1 = ln1_ref[0]                               # (2, C): [gamma; beta]
    xn = _layernorm(x, ln1[0:1], ln1[1:2]).astype(jnp.bfloat16)

    # fused QKV: one full-width MXU contraction (scale folded into q weights).
    qkv = jnp.dot(xn, wqkv_ref[0],
                  preferred_element_type=jnp.float32) + bqkv_ref[0]   # (Np, 3C)

    def split_heads(slab):                         # (Np, C) f32 -> (H, Np, hd) bf16
        slab = slab.astype(jnp.bfloat16)
        return jnp.stack([slab[:, h * hd:(h + 1) * hd] for h in range(H)], axis=0)

    q = split_heads(qkv[:, 0 * C:1 * C])
    k = split_heads(qkv[:, 1 * C:2 * C])
    v = split_heads(qkv[:, 2 * C:3 * C])

    s = jnp.einsum('hqd,hkd->hqk', q, k,
                   preferred_element_type=jnp.float32)                # (H, Np, Np)
    if n_valid < Np:                               # zero-prob padded key columns
        key_idx = lax.broadcasted_iota(jnp.int32, (1, 1, Np), 2)
        s = jnp.where(key_idx < n_valid, s, -1e30)
    s = s - jnp.max(s, axis=-1, keepdims=True)
    e = jnp.exp(s)
    den = jnp.sum(e, axis=-1, keepdims=True)
    r = pl.reciprocal(den, approx=True)
    r = r * (2.0 - den * r)                        # one Newton step -> rows sum ~1
    a = e * r                                      # softmax, (H, Np, Np) f32

    if attn_ref is not None:
        attn_ref[0, 0] = a                         # emitted attention map

    ctx = jnp.einsum('hqk,hkd->hqd', a.astype(jnp.bfloat16), v,
                     preferred_element_type=jnp.float32)              # (H, Np, hd)
    ctx = ctx.astype(jnp.bfloat16)
    ctx2 = jnp.concatenate([ctx[h] for h in range(H)], axis=-1)       # (Np, C)
    attn_out = jnp.dot(ctx2, wp_ref[0],
                       preferred_element_type=jnp.float32) + bp_ref[0]
    x = x + attn_out                                                   # residual 1

    # ---------------- MLP ----------------
    ln2 = ln2_ref[0]
    xn2 = _layernorm(x, ln2[0:1], ln2[1:2]).astype(jnp.bfloat16)
    h1 = jnp.dot(xn2, w1_ref[0], preferred_element_type=jnp.float32) + b1_ref[0]
    h1 = _gelu_tanh(h1).astype(jnp.bfloat16)
    h2 = jnp.dot(h1, w2_ref[0], preferred_element_type=jnp.float32) + b2_ref[0]
    o_ref[0] = x + h2                                                  # residual 2


def run_blocks(x, bw, *, num_heads, n_valid, emit_attn=True):
    """Run all transformer blocks in one pallas_call. x: (B, Np, C) f32."""
    B, Np, C = x.shape
    depth = bw["wqkv"].shape[0]
    H = num_heads
    Hm = bw["w1"].shape[-1]
    C3 = bw["wqkv"].shape[-1]

    def wmap(b, d):
        return (d, 0, 0)

    in_specs = [
        pl.BlockSpec((1, Np, C), lambda b, d: (b, 0, 0)),    # residual input (read at d==0)
        pl.BlockSpec((1, 2, C), wmap),                       # ln1 (gamma, beta)
        pl.BlockSpec((1, C, C3), wmap),                      # wqkv (bf16, scale folded)
        pl.BlockSpec((1, 1, C3), wmap),                      # bqkv
        pl.BlockSpec((1, C, C), wmap),                       # wp (bf16)
        pl.BlockSpec((1, 1, C), wmap),                       # bp
        pl.BlockSpec((1, 2, C), wmap),                       # ln2 (gamma, beta)
        pl.BlockSpec((1, C, Hm), wmap),                      # fc1 w (bf16)
        pl.BlockSpec((1, 1, Hm), wmap),                      # fc1 b
        pl.BlockSpec((1, Hm, C), wmap),                      # fc2 w (bf16)
        pl.BlockSpec((1, 1, C), wmap),                       # fc2 b
    ]
    x_out_spec = pl.BlockSpec((1, Np, C), lambda b, d: (b, 0, 0))
    if emit_attn:
        out_shape = (jax.ShapeDtypeStruct((B, Np, C), jnp.float32),
                     jax.ShapeDtypeStruct((B, depth, H, Np, Np), jnp.float32))
        out_specs = (x_out_spec,
                     pl.BlockSpec((1, 1, H, Np, Np), lambda b, d: (b, d, 0, 0, 0)))
    else:
        out_shape = jax.ShapeDtypeStruct((B, Np, C), jnp.float32)
        out_specs = x_out_spec

    est = _block_vmem_estimate(Np, C, Hm, H, emit_attn)
    out = pl.pallas_call(
        partial(_blocks_kernel, num_heads=H, n_valid=n_valid),
        out_shape=out_shape,
        grid=(B, depth),
        in_specs=in_specs,
        out_specs=out_specs,
        compiler_params=pltpu.CompilerParams(
            dimension_semantics=("parallel", "arbitrary"),
            vmem_limit_bytes=_vmem_limit(est)),
    )(x, bw["ln1"], bw["wqkv"], bw["bqkv"], bw["wp"], bw["bp"],
      bw["ln2"], bw["w1"], bw["b1"], bw["w2"], bw["b2"])
    if emit_attn:
        return out
    return out, None


# ---------------------------------------------------------------------------
# XLA-side glue (patch embed GEMM, final LayerNorm + classifier heads)
# ---------------------------------------------------------------------------
def patchify(x, p):
    # NCHW -> (B, num_patches, C*p*p), same (c, ph, pw) ordering as the
    # flattened Conv2d weight, patches in row-major (i, j) order.
    B, C, H, W = x.shape
    Hp, Wp = H // p, W // p
    x = x.reshape(B, C, Hp, p, Wp, p).transpose(0, 2, 4, 1, 3, 5)
    return x.reshape(B, Hp * Wp, C * p * p)


def head_xla(tokens, params):
    g, b = params["norm_g"], params["norm_b"]
    mu = jnp.mean(tokens, axis=-1, keepdims=True)
    var = jnp.mean(jnp.square(tokens - mu), axis=-1, keepdims=True)
    xn = (tokens - mu) * lax.rsqrt(var + EPS) * g + b          # (B, 2, C)
    cls_t, dist_t = xn[:, 0, :], xn[:, 1, :]
    logits = cls_t @ params["head_w"] + params["head_b"]
    logits_d = dist_t @ params["head_dist_w"] + params["head_dist_b"]
    return 0.5 * (logits + logits_d)                           # (head + head_dist)/2


def distilled_vit_forward(x, params, *, patch, num_heads, return_attns=True,
                          token_pad=8):
    """Inference forward: ((head(cls)+head_dist(dist))/2, [attn per block])."""
    B = x.shape[0]
    patches = patchify(x, patch)                                       # (B, P, Din)
    emb = jnp.einsum('bpd,dc->bpc', patches, params["patch_w"]) + params["patch_b"]
    C = emb.shape[-1]
    cls = jnp.broadcast_to(params["cls_token"], (B, 1, C))
    dist = jnp.broadcast_to(params["dist_token"], (B, 1, C))
    h = jnp.concatenate([cls, dist, emb], axis=1) + params["pos_embed"]
    # pos_drop / attn_drop / proj_drop / drop_path: identity in eval mode.
    N = h.shape[1]
    # pad tokens to a sublane-aligned count (use token_pad=128 for lane-dense
    # attention stores at real DeiT sizes); padded keys get zero probability.
    Np = _round_up(max(N, token_pad), token_pad)
    if Np != N:
        h = jnp.pad(h, ((0, 0), (0, Np - N), (0, 0)))

    h_out, attn_all = run_blocks(h, params["blocks_packed"], num_heads=num_heads,
                                 n_valid=N, emit_attn=return_attns)

    logits = head_xla(h_out[:, :2, :], params)
    if return_attns:
        depth = attn_all.shape[1]
        attns = [attn_all[:, d, :, :N, :N] for d in range(depth)]
    else:
        attns = None
    return logits, attns


# ---------------------------------------------------------------------------
# parameter construction (PyTorch-layout init, then kernel-friendly repack)
# ---------------------------------------------------------------------------
def init_params(key, *, in_chans, patch, embed_dim, depth, num_heads, mlp_ratio,
                num_classes, num_patches):
    keys = iter(jax.random.split(key, 256))

    def nrm(shape, std=0.02):
        return (std * jax.random.normal(next(keys), shape)).astype(jnp.float32)

    patch_dim = in_chans * patch * patch
    hidden = int(embed_dim * mlp_ratio)
    params = {
        "patch_w": nrm((patch_dim, embed_dim)),          # Conv2d weight, flattened
        "patch_b": jnp.zeros((1, embed_dim), jnp.float32),
        "cls_token": nrm((1, 1, embed_dim)),
        "dist_token": nrm((1, 1, embed_dim)),
        "pos_embed": nrm((1, num_patches + 2, embed_dim)),
        "norm_g": jnp.ones((1, embed_dim), jnp.float32),
        "norm_b": jnp.zeros((1, embed_dim), jnp.float32),
        "head_w": nrm((embed_dim, num_classes)),
        "head_b": jnp.zeros((1, num_classes), jnp.float32),
        "head_dist_w": nrm((embed_dim, num_classes)),
        "head_dist_b": jnp.zeros((1, num_classes), jnp.float32),
        "blocks": [],
    }
    for _ in range(depth):
        params["blocks"].append({
            "ln1_g": jnp.ones((1, embed_dim), jnp.float32),
            "ln1_b": jnp.zeros((1, embed_dim), jnp.float32),
            "qkv_w": nrm((embed_dim, 3 * embed_dim)),
            "qkv_b": jnp.zeros((1, 3 * embed_dim), jnp.float32),   # qkv_bias=True
            "proj_w": nrm((embed_dim, embed_dim)),
            "proj_b": jnp.zeros((1, embed_dim), jnp.float32),
            "ln2_g": jnp.ones((1, embed_dim), jnp.float32),
            "ln2_b": jnp.zeros((1, embed_dim), jnp.float32),
            "fc1_w": nrm((embed_dim, hidden)),
            "fc1_b": jnp.zeros((1, hidden), jnp.float32),
            "fc2_w": nrm((hidden, embed_dim)),
            "fc2_b": jnp.zeros((1, embed_dim), jnp.float32),
        })
    return params


def prepare_params(raw, *, num_heads):
    """Repack params for the fused kernel:
       * matmul weights cast to bf16 (biases / LN params / residual stay f32),
       * attention scale hd**-0.5 folded into the q columns of wqkv / bqkv,
       * per-layer weights stacked along a leading depth axis."""
    C = raw["patch_w"].shape[1]
    hd = C // num_heads
    scale = hd ** -0.5

    def fold_qkv_w(bp):
        w = bp["qkv_w"].astype(jnp.float32)
        w = w.at[:, :C].multiply(scale)
        return w.astype(jnp.bfloat16)

    def fold_qkv_b(bp):
        b = bp["qkv_b"].astype(jnp.float32)
        return b.at[:, :C].multiply(scale)

    def stack(fn):
        return jnp.stack([fn(bp) for bp in raw["blocks"]], axis=0)

    blocks_packed = {
        "ln1":  stack(lambda bp: jnp.concatenate([bp["ln1_g"], bp["ln1_b"]], axis=0)),
        "wqkv": stack(fold_qkv_w),                                     # (D, C, 3C) bf16
        "bqkv": stack(fold_qkv_b),                                     # (D, 1, 3C) f32
        "wp":   stack(lambda bp: bp["proj_w"].astype(jnp.bfloat16)),   # (D, C, C)
        "bp":   stack(lambda bp: bp["proj_b"]),                        # (D, 1, C)
        "ln2":  stack(lambda bp: jnp.concatenate([bp["ln2_g"], bp["ln2_b"]], axis=0)),
        "w1":   stack(lambda bp: bp["fc1_w"].astype(jnp.bfloat16)),    # (D, C, Hm)
        "b1":   stack(lambda bp: bp["fc1_b"]),                         # (D, 1, Hm)
        "w2":   stack(lambda bp: bp["fc2_w"].astype(jnp.bfloat16)),    # (D, Hm, C)
        "b2":   stack(lambda bp: bp["fc2_b"]),                         # (D, 1, C)
    }
    return {
        "patch_w": raw["patch_w"], "patch_b": raw["patch_b"],
        "cls_token": raw["cls_token"], "dist_token": raw["dist_token"],
        "pos_embed": raw["pos_embed"],
        "norm_g": raw["norm_g"], "norm_b": raw["norm_b"],
        "head_w": raw["head_w"], "head_b": raw["head_b"],
        "head_dist_w": raw["head_dist_w"], "head_dist_b": raw["head_dist_b"],
        "blocks_packed": blocks_packed,
    }


# ---------------------------------------------------------------------------
if __name__ == "__main__":
    # small but structurally faithful config
    B, in_chans, img, patch = 2, 4, 16, 4
    embed_dim, depth, num_heads, mlp_ratio, num_classes = 32, 2, 4, 4.0, 10
    num_patches = (img // patch) ** 2        # 16 patches -> N = 18 tokens

    key = jax.random.PRNGKey(0)
    kx, kp = jax.random.split(key)
    x = jax.random.normal(kx, (B, in_chans, img, img), dtype=jnp.float32)
    raw = init_params(
        kp, in_chans=in_chans, patch=patch, embed_dim=embed_dim, depth=depth,
        num_heads=num_heads, mlp_ratio=mlp_ratio, num_classes=num_classes,
        num_patches=num_patches,
    )
    params = prepare_params(raw, num_heads=num_heads)

    # eval path with attention maps (exact module output structure)
    logits, attns = distilled_vit_forward(
        x, params, patch=patch, num_heads=num_heads, return_attns=True)
    logits = jax.block_until_ready(logits)
    attns = [jax.block_until_ready(a) for a in attns]

    assert logits.shape == (B, num_classes)
    assert len(attns) == depth
    assert attns[0].shape == (B, num_heads, num_patches + 2, num_patches + 2)
    assert bool(jnp.all(jnp.isfinite(logits)))
    # padded key columns carry exactly zero probability -> rows sum to ~1
    row_sums = jnp.sum(attns[0], axis=-1)
    assert bool(jnp.all(jnp.abs(row_sums - 1.0) < 1e-3))

    # inference fast path: skip the (B, depth, H, N, N) attention-map writeback
    logits_fast, _ = distilled_vit_forward(
        x, params, patch=patch, num_heads=num_heads, return_attns=False)
    logits_fast = jax.block_until_ready(logits_fast)
    assert logits_fast.shape == (B, num_classes)
    assert jnp.allclose(logits, logits_fast, rtol=1e-3, atol=1e-3)

    print("KERNEL_OK")
</pallas_src>

<mosaic_0001>
module attributes {stable_mosaic.version = 11 : i64} {
  func.func @_blocks_kernel(%arg0: i32, %arg1: i32, %arg2: memref<1x24x32xf32, #tpu.memory_space<vmem>>, %arg3: memref<1x2x32xf32, #tpu.memory_space<vmem>>, %arg4: memref<1x32x96xbf16, #tpu.memory_space<vmem>>, %arg5: memref<1x1x96xf32, #tpu.memory_space<vmem>>, %arg6: memref<1x32x32xbf16, #tpu.memory_space<vmem>>, %arg7: memref<1x1x32xf32, #tpu.memory_space<vmem>>, %arg8: memref<1x2x32xf32, #tpu.memory_space<vmem>>, %arg9: memref<1x32x128xbf16, #tpu.memory_space<vmem>>, %arg10: memref<1x1x128xf32, #tpu.memory_space<vmem>>, %arg11: memref<1x128x32xbf16, #tpu.memory_space<vmem>>, %arg12: memref<1x1x32xf32, #tpu.memory_space<vmem>>, %arg13: memref<1x24x32xf32, #tpu.memory_space<vmem>>, %arg14: memref<1x1x4x24x24xf32, #tpu.memory_space<vmem>>) attributes {dimension_semantics = [#tpu.dimension_semantics<parallel>, #tpu.dimension_semantics<arbitrary>], iteration_bounds = array<i64: 2, 2>, scalar_prefetch = 0 : i64, scratch_operands = 0 : i64, tpu.core_type = #tpu.core_type<tc>, window_params = [{transform_indices = @transform_0, window_bounds = array<i64: 1, 24, 32>}, {transform_indices = @transform_1, window_bounds = array<i64: 1, 2, 32>}, {transform_indices = @transform_2, window_bounds = array<i64: 1, 32, 96>}, {transform_indices = @transform_3, window_bounds = array<i64: 1, 1, 96>}, {transform_indices = @transform_4, window_bounds = array<i64: 1, 32, 32>}, {transform_indices = @transform_5, window_bounds = array<i64: 1, 1, 32>}, {transform_indices = @transform_6, window_bounds = array<i64: 1, 2, 32>}, {transform_indices = @transform_7, window_bounds = array<i64: 1, 32, 128>}, {transform_indices = @transform_8, window_bounds = array<i64: 1, 1, 128>}, {transform_indices = @transform_9, window_bounds = array<i64: 1, 128, 32>}, {transform_indices = @transform_10, window_bounds = array<i64: 1, 1, 32>}, {transform_indices = @transform_11, window_bounds = array<i64: 1, 24, 32>}, {transform_indices = @transform_12, window_bounds = array<i64: 1, 1, 4, 24, 24>}]} {
    %c0_i32 = arith.constant 0 : i32
    %0 = arith.cmpi eq, %arg1, %c0_i32 : i32
    %1 = arith.extui %0 : i1 to i32
    %c0_i32_0 = arith.constant 0 : i32
    %2 = arith.cmpi ne, %1, %c0_i32_0 : i32
    scf.if %2 {
      %c0_64 = arith.constant 0 : index
      %c0_65 = arith.constant 0 : index
      %c0_66 = arith.constant 0 : index
      %176 = vector.load %arg2[%c0_64, %c0_65, %c0_66] : memref<1x24x32xf32, #tpu.memory_space<vmem>>, vector<1x24x32xf32>
      %177 = vector.shape_cast %176 : vector<1x24x32xf32> to vector<24x32xf32>
      %c0_67 = arith.constant 0 : index
      %c0_68 = arith.constant 0 : index
      %c0_69 = arith.constant 0 : index
      %178 = vector.load %arg13[%c0_67, %c0_68, %c0_69] : memref<1x24x32xf32, #tpu.memory_space<vmem>>, vector<1x24x32xf32>
      %179 = vector.shape_cast %178 : vector<1x24x32xf32> to vector<24x32xf32>
      %180 = vector.shape_cast %177 : vector<24x32xf32> to vector<1x24x32xf32>
      tpu.vector_store %arg13[%c0_67, %c0_68, %c0_69], %180 {strides = array<i32>} : memref<1x24x32xf32, #tpu.memory_space<vmem>>, vector<1x24x32xf32>,
    } else {
    }
    %c0 = arith.constant 0 : index
    %c0_1 = arith.constant 0 : index
    %c0_2 = arith.constant 0 : index
    %3 = vector.load %arg13[%c0, %c0_1, %c0_2] : memref<1x24x32xf32, #tpu.memory_space<vmem>>, vector<1x24x32xf32>
    %4 = vector.shape_cast %3 : vector<1x24x32xf32> to vector<24x32xf32>
    %c0_3 = arith.constant 0 : index
    %c0_4 = arith.constant 0 : index
    %c0_5 = arith.constant 0 : index
    %5 = vector.load %arg3[%c0_3, %c0_4, %c0_5] : memref<1x2x32xf32, #tpu.memory_space<vmem>>, vector<1x2x32xf32>
    %6 = vector.shape_cast %5 : vector<1x2x32xf32> to vector<2x32xf32>
    %7 = vector.extract_strided_slice %6 {offsets = [0, 0], sizes = [1, 32], strides = [1, 1]} : vector<2x32xf32> to vector<1x32xf32>
    %8 = vector.extract_strided_slice %6 {offsets = [1, 0], sizes = [1, 32], strides = [1, 1]} : vector<2x32xf32> to vector<1x32xf32>
    %cst = arith.constant dense<0.000000e+00> : vector<24xf32>
    %9 = vector.multi_reduction <add>, %4, %cst [1] : vector<24x32xf32> to vector<24xf32>
    %10 = vector.shape_cast %9 : vector<24xf32> to vector<24x1xf32>
    %cst_6 = arith.constant 3.200000e+01 : f32
    %11 = vector.broadcast %cst_6 : f32 to vector<24x1xf32>
    %12 = arith.divf %10, %11 : vector<24x1xf32>
    %13 = vector.broadcast %12 : vector<24x1xf32> to vector<24x32xf32>
    %14 = arith.subf %4, %13 : vector<24x32xf32>
    %15 = arith.mulf %14, %14 : vector<24x32xf32>
    %cst_7 = arith.constant dense<0.000000e+00> : vector<24xf32>
    %16 = vector.multi_reduction <add>, %15, %cst_7 [1] : vector<24x32xf32> to vector<24xf32>
    %17 = vector.shape_cast %16 : vector<24xf32> to vector<24x1xf32>
    %cst_8 = arith.constant 3.200000e+01 : f32
    %18 = vector.broadcast %cst_8 : f32 to vector<24x1xf32>
    %19 = arith.divf %17, %18 : vector<24x1xf32>
    %20 = vector.broadcast %12 : vector<24x1xf32> to vector<24x32xf32>
    %21 = arith.subf %4, %20 : vector<24x32xf32>
    %cst_9 = arith.constant 9.99999997E-7 : f32
    %22 = vector.broadcast %cst_9 : f32 to vector<24x1xf32>
    %23 = arith.addf %19, %22 : vector<24x1xf32>
    %24 = math.rsqrt %23 : vector<24x1xf32>
    %25 = vector.broadcast %24 : vector<24x1xf32> to vector<24x32xf32>
    %26 = arith.mulf %21, %25 : vector<24x32xf32>
    %27 = vector.broadcast %7 : vector<1x32xf32> to vector<24x32xf32>
    %28 = arith.mulf %26, %27 : vector<24x32xf32>
    %29 = vector.broadcast %8 : vector<1x32xf32> to vector<24x32xf32>
    %30 = arith.addf %28, %29 : vector<24x32xf32>
    %31 = arith.truncf %30 : vector<24x32xf32> to vector<24x32xbf16>
    %c0_10 = arith.constant 0 : index
    %c0_11 = arith.constant 0 : index
    %c0_12 = arith.constant 0 : index
    %32 = vector.load %arg4[%c0_10, %c0_11, %c0_12] : memref<1x32x96xbf16, #tpu.memory_space<vmem>>, vector<1x32x96xbf16>
    %33 = vector.shape_cast %32 : vector<1x32x96xbf16> to vector<32x96xbf16>
    %cst_13 = arith.constant dense<0.000000e+00> : vector<24x96xf32>
    %34 = tpu.matmul %31, %33, %cst_13 {dimension_numbers = #tpu.dot_dimension_numbers<[1], [0], [0], [1], [0, 0, 1, 1], [], []>} : vector<24x32xbf16>, vector<32x96xbf16>, vector<24x96xf32> -> vector<24x96xf32>
    %c0_14 = arith.constant 0 : index
    %c0_15 = arith.constant 0 : index
    %c0_16 = arith.constant 0 : index
    %35 = vector.load %arg5[%c0_14, %c0_15, %c0_16] : memref<1x1x96xf32, #tpu.memory_space<vmem>>, vector<1x1x96xf32>
    %36 = vector.shape_cast %35 : vector<1x1x96xf32> to vector<1x96xf32>
    %37 = vector.broadcast %36 : vector<1x96xf32> to vector<24x96xf32>
    %38 = arith.addf %34, %37 : vector<24x96xf32>
    %39 = vector.extract_strided_slice %38 {offsets = [0, 0], sizes = [24, 32], strides = [1, 1]} : vector<24x96xf32> to vector<24x32xf32>
    %40 = arith.truncf %39 : vector<24x32xf32> to vector<24x32xbf16>
    %41 = vector.extract_strided_slice %40 {offsets = [0, 0], sizes = [24, 8], strides = [1, 1]} : vector<24x32xbf16> to vector<24x8xbf16>
    %42 = vector.extract_strided_slice %40 {offsets = [0, 8], sizes = [24, 8], strides = [1, 1]} : vector<24x32xbf16> to vector<24x8xbf16>
    %43 = vector.extract_strided_slice %40 {offsets = [0, 16], sizes = [24, 8], strides = [1, 1]} : vector<24x32xbf16> to vector<24x8xbf16>
    %44 = vector.extract_strided_slice %40 {offsets = [0, 24], sizes = [24, 8], strides = [1, 1]} : vector<24x32xbf16> to vector<24x8xbf16>
    %45 = vector.shape_cast %41 : vector<24x8xbf16> to vector<1x24x8xbf16>
    %46 = vector.shape_cast %42 : vector<24x8xbf16> to vector<1x24x8xbf16>
    %47 = vector.shape_cast %43 : vector<24x8xbf16> to vector<1x24x8xbf16>
    %48 = vector.shape_cast %44 : vector<24x8xbf16> to vector<1x24x8xbf16>
    %49 = tpu.concatenate %45, %46, %47, %48 in 0 : vector<1x24x8xbf16>, vector<1x24x8xbf16>, vector<1x24x8xbf16>, vector<1x24x8xbf16> -> vector<4x24x8xbf16>
    %50 = vector.extract_strided_slice %38 {offsets = [0, 32], sizes = [24, 32], strides = [1, 1]} : vector<24x96xf32> to vector<24x32xf32>
    %51 = arith.truncf %50 : vector<24x32xf32> to vector<24x32xbf16>
    %52 = vector.extract_strided_slice %51 {offsets = [0, 0], sizes = [24, 8], strides = [1, 1]} : vector<24x32xbf16> to vector<24x8xbf16>
    %53 = vector.extract_strided_slice %51 {offsets = [0, 8], sizes = [24, 8], strides = [1, 1]} : vector<24x32xbf16> to vector<24x8xbf16>
    %54 = vector.extract_strided_slice %51 {offsets = [0, 16], sizes = [24, 8], strides = [1, 1]} : vector<24x32xbf16> to vector<24x8xbf16>
    %55 = vector.extract_strided_slice %51 {offsets = [0, 24], sizes = [24, 8], strides = [1, 1]} : vector<24x32xbf16> to vector<24x8xbf16>
    %56 = vector.shape_cast %52 : vector<24x8xbf16> to vector<1x24x8xbf16>
    %57 = vector.shape_cast %53 : vector<24x8xbf16> to vector<1x24x8xbf16>
    %58 = vector.shape_cast %54 : vector<24x8xbf16> to vector<1x24x8xbf16>
    %59 = vector.shape_cast %55 : vector<24x8xbf16> to vector<1x24x8xbf16>
    %60 = tpu.concatenate %56, %57, %58, %59 in 0 : vector<1x24x8xbf16>, vector<1x24x8xbf16>, vector<1x24x8xbf16>, vector<1x24x8xbf16> -> vector<4x24x8xbf16>
    %61 = vector.extract_strided_slice %38 {offsets = [0, 64], sizes = [24, 32], strides = [1, 1]} : vector<24x96xf32> to vector<24x32xf32>
    %62 = arith.truncf %61 : vector<24x32xf32> to vector<24x32xbf16>
    %63 = vector.extract_strided_slice %62 {offsets = [0, 0], sizes = [24, 8], strides = [1, 1]} : vector<24x32xbf16> to vector<24x8xbf16>
    %64 = vector.extract_strided_slice %62 {offsets = [0, 8], sizes = [24, 8], strides = [1, 1]} : vector<24x32xbf16> to vector<24x8xbf16>
    %65 = vector.extract_strided_slice %62 {offsets = [0, 16], sizes = [24, 8], strides = [1, 1]} : vector<24x32xbf16> to vector<24x8xbf16>
    %66 = vector.extract_strided_slice %62 {offsets = [0, 24], sizes = [24, 8], strides = [1, 1]} : vector<24x32xbf16> to vector<24x8xbf16>
    %67 = vector.shape_cast %63 : vector<24x8xbf16> to vector<1x24x8xbf16>
    %68 = vector.shape_cast %64 : vector<24x8xbf16> to vector<1x24x8xbf16>
    %69 = vector.shape_cast %65 : vector<24x8xbf16> to vector<1x24x8xbf16>
    %70 = vector.shape_cast %66 : vector<24x8xbf16> to vector<1x24x8xbf16>
    %71 = tpu.concatenate %67, %68, %69, %70 in 0 : vector<1x24x8xbf16>, vector<1x24x8xbf16>, vector<1x24x8xbf16>, vector<1x24x8xbf16> -> vector<4x24x8xbf16>
    "tpu.trace_start"() <{level = 10 : i32, message = "hqd,hkd->hqk"}> : () -> ()
    %cst_17 = arith.constant dense<0.000000e+00> : vector<4x24x24xf32>
    %72 = tpu.matmul %49, %60, %cst_17 {dimension_numbers = #tpu.dot_dimension_numbers<[2], [2], [1], [1], [0, 0, 0, 1, 1, 1], [0], [0]>} : vector<4x24x8xbf16>, vector<4x24x8xbf16>, vector<4x24x24xf32> -> vector<4x24x24xf32>
    "tpu.trace_stop"() : () -> ()
    %73 = tpu.iota {dimensions = array<i32: 2>} : vector<1x1x24xi32>
    %c18_i32 = arith.constant 18 : i32
    %74 = vector.broadcast %c18_i32 : i32 to vector<1x1x24xi32>
    %75 = arith.cmpi slt, %73, %74 : vector<1x1x24xi32>
    %cst_18 = arith.constant -1.000000e+30 : f32
    %76 = vector.shape_cast %75 : vector<1x1x24xi1> to vector<1x1x24xi1>
    %77 = vector.broadcast %76 : vector<1x1x24xi1> to vector<4x24x24xi1>
    %78 = vector.broadcast %cst_18 : f32 to vector<4x24x24xf32>
    %79 = arith.select %77, %72, %78 : vector<4x24x24xi1>, vector<4x24x24xf32>
    %cst_19 = arith.constant dense<0xFF800000> : vector<4x24xf32>
    %80 = vector.multi_reduction <maximumf>, %79, %cst_19 [2] : vector<4x24x24xf32> to vector<4x24xf32>
    %81 = vector.shape_cast %80 : vector<4x24xf32> to vector<4x24x1xf32>
    %82 = vector.broadcast %81 : vector<4x24x1xf32> to vector<4x24x24xf32>
    %83 = arith.subf %79, %82 : vector<4x24x24xf32>
    %84 = math.exp %83 : vector<4x24x24xf32>
    %cst_20 = arith.constant dense<0.000000e+00> : vector<4x24xf32>
    %85 = vector.multi_reduction <add>, %84, %cst_20 [2] : vector<4x24x24xf32> to vector<4x24xf32>
    %86 = vector.shape_cast %85 : vector<4x24xf32> to vector<4x24x1xf32>
    %87 = tpu.reciprocal %86 {approx = true} : vector<4x24x1xf32> -> vector<4x24x1xf32>
    %88 = arith.mulf %86, %87 : vector<4x24x1xf32>
    %cst_21 = arith.constant 2.000000e+00 : f32
    %89 = vector.broadcast %cst_21 : f32 to vector<4x24x1xf32>
    %90 = arith.subf %89, %88 : vector<4x24x1xf32>
    %91 = arith.mulf %87, %90 : vector<4x24x1xf32>
    %92 = vector.broadcast %91 : vector<4x24x1xf32> to vector<4x24x24xf32>
    %93 = arith.mulf %84, %92 : vector<4x24x24xf32>
    %c0_22 = arith.constant 0 : index
    %c0_23 = arith.constant 0 : index
    %c0_24 = arith.constant 0 : index
    %c0_25 = arith.constant 0 : index
    %c0_26 = arith.constant 0 : index
    %94 = vector.load %arg14[%c0_22, %c0_23, %c0_24, %c0_25, %c0_26] : memref<1x1x4x24x24xf32, #tpu.memory_space<vmem>>, vector<1x1x4x24x24xf32>
    %95 = vector.shape_cast %94 : vector<1x1x4x24x24xf32> to vector<4x24x24xf32>
    %96 = vector.shape_cast %93 : vector<4x24x24xf32> to vector<1x1x4x24x24xf32>
    tpu.vector_store %arg14[%c0_22, %c0_23, %c0_24, %c0_25, %c0_26], %96 {strides = array<i32>} : memref<1x1x4x24x24xf32, #tpu.memory_space<vmem>>, vector<1x1x4x24x24xf32>,
    %97 = arith.truncf %93 : vector<4x24x24xf32> to vector<4x24x24xbf16>
    "tpu.trace_start"() <{level = 10 : i32, message = "hqk,hkd->hqd"}> : () -> ()
    %cst_27 = arith.constant dense<0.000000e+00> : vector<4x24x8xf32>
    %98 = tpu.matmul %97, %71, %cst_27 {dimension_numbers = #tpu.dot_dimension_numbers<[2], [1], [1], [2], [0, 0, 0, 1, 1, 2], [0], [0]>} : vector<4x24x24xbf16>, vector<4x24x8xbf16>, vector<4x24x8xf32> -> vector<4x24x8xf32>
    "tpu.trace_stop"() : () -> ()
    %99 = arith.truncf %98 : vector<4x24x8xf32> to vector<4x24x8xbf16>
    %100 = vector.extract_strided_slice %99 {offsets = [0, 0, 0], sizes = [1, 24, 8], strides = [1, 1, 1]} : vector<4x24x8xbf16> to vector<1x24x8xbf16>
    %101 = vector.shape_cast %100 : vector<1x24x8xbf16> to vector<24x8xbf16>
    %102 = vector.extract_strided_slice %99 {offsets = [1, 0, 0], sizes = [1, 24, 8], strides = [1, 1, 1]} : vector<4x24x8xbf16> to vector<1x24x8xbf16>
    %103 = vector.shape_cast %102 : vector<1x24x8xbf16> to vector<24x8xbf16>
    %104 = vector.extract_strided_slice %99 {offsets = [2, 0, 0], sizes = [1, 24, 8], strides = [1, 1, 1]} : vector<4x24x8xbf16> to vector<1x24x8xbf16>
    %105 = vector.shape_cast %104 : vector<1x24x8xbf16> to vector<24x8xbf16>
    %106 = vector.extract_strided_slice %99 {offsets = [3, 0, 0], sizes = [1, 24, 8], strides = [1, 1, 1]} : vector<4x24x8xbf16> to vector<1x24x8xbf16>
    %107 = vector.shape_cast %106 : vector<1x24x8xbf16> to vector<24x8xbf16>
    %108 = tpu.concatenate %101, %103, %105, %107 in 1 : vector<24x8xbf16>, vector<24x8xbf16>, vector<24x8xbf16>, vector<24x8xbf16> -> vector<24x32xbf16>
    %c0_28 = arith.constant 0 : index
    %c0_29 = arith.constant 0 : index
    %c0_30 = arith.constant 0 : index
    %109 = vector.load %arg6[%c0_28, %c0_29, %c0_30] : memref<1x32x32xbf16, #tpu.memory_space<vmem>>, vector<1x32x32xbf16>
    %110 = vector.shape_cast %109 : vector<1x32x32xbf16> to vector<32x32xbf16>
    %cst_31 = arith.constant dense<0.000000e+00> : vector<24x32xf32>
    %111 = tpu.matmul %108, %110, %cst_31 {dimension_numbers = #tpu.dot_dimension_numbers<[1], [0], [0], [1], [0, 0, 1, 1], [], []>} : vector<24x32xbf16>, vector<32x32xbf16>, vector<24x32xf32> -> vector<24x32xf32>
    %c0_32 = arith.constant 0 : index
    %c0_33 = arith.constant 0 : index
    %c0_34 = arith.constant 0 : index
    %112 = vector.load %arg7[%c0_32, %c0_33, %c0_34] : memref<1x1x32xf32, #tpu.memory_space<vmem>>, vector<1x1x32xf32>
    %113 = vector.shape_cast %112 : vector<1x1x32xf32> to vector<1x32xf32>
    %114 = vector.broadcast %113 : vector<1x32xf32> to vector<24x32xf32>
    %115 = arith.addf %111, %114 : vector<24x32xf32>
    %116 = arith.addf %4, %115 : vector<24x32xf32>
    %c0_35 = arith.constant 0 : index
    %c0_36 = arith.constant 0 : index
    %c0_37 = arith.constant 0 : index
    %117 = vector.load %arg8[%c0_35, %c0_36, %c0_37] : memref<1x2x32xf32, #tpu.memory_space<vmem>>, vector<1x2x32xf32>
    %118 = vector.shape_cast %117 : vector<1x2x32xf32> to vector<2x32xf32>
    %119 = vector.extract_strided_slice %118 {offsets = [0, 0], sizes = [1, 32], strides = [1, 1]} : vector<2x32xf32> to vector<1x32xf32>
    %120 = vector.extract_strided_slice %118 {offsets = [1, 0], sizes = [1, 32], strides = [1, 1]} : vector<2x32xf32> to vector<1x32xf32>
    %cst_38 = arith.constant dense<0.000000e+00> : vector<24xf32>
    %121 = vector.multi_reduction <add>, %116, %cst_38 [1] : vector<24x32xf32> to vector<24xf32>
    %122 = vector.shape_cast %121 : vector<24xf32> to vector<24x1xf32>
    %cst_39 = arith.constant 3.200000e+01 : f32
    %123 = vector.broadcast %cst_39 : f32 to vector<24x1xf32>
    %124 = arith.divf %122, %123 : vector<24x1xf32>
    %125 = vector.broadcast %124 : vector<24x1xf32> to vector<24x32xf32>
    %126 = arith.subf %116, %125 : vector<24x32xf32>
    %127 = arith.mulf %126, %126 : vector<24x32xf32>
    %cst_40 = arith.constant dense<0.000000e+00> : vector<24xf32>
    %128 = vector.multi_reduction <add>, %127, %cst_40 [1] : vector<24x32xf32> to vector<24xf32>
    %129 = vector.shape_cast %128 : vector<24xf32> to vector<24x1xf32>
    %cst_41 = arith.constant 3.200000e+01 : f32
    %130 = vector.broadcast %cst_41 : f32 to vector<24x1xf32>
    %131 = arith.divf %129, %130 : vector<24x1xf32>
    %132 = vector.broadcast %124 : vector<24x1xf32> to vector<24x32xf32>
    %133 = arith.subf %116, %132 : vector<24x32xf32>
    %cst_42 = arith.constant 9.99999997E-7 : f32
    %134 = vector.broadcast %cst_42 : f32 to vector<24x1xf32>
    %135 = arith.addf %131, %134 : vector<24x1xf32>
    %136 = math.rsqrt %135 : vector<24x1xf32>
    %137 = vector.broadcast %136 : vector<24x1xf32> to vector<24x32xf32>
    %138 = arith.mulf %133, %137 : vector<24x32xf32>
    %139 = vector.broadcast %119 : vector<1x32xf32> to vector<24x32xf32>
    %140 = arith.mulf %138, %139 : vector<24x32xf32>
    %141 = vector.broadcast %120 : vector<1x32xf32> to vector<24x32xf32>
    %142 = arith.addf %140, %141 : vector<24x32xf32>
    %143 = arith.truncf %142 : vector<24x32xf32> to vector<24x32xbf16>
    %c0_43 = arith.constant 0 : index
    %c0_44 = arith.constant 0 : index
    %c0_45 = arith.constant 0 : index
    %144 = vector.load %arg9[%c0_43, %c0_44, %c0_45] : memref<1x32x128xbf16, #tpu.memory_space<vmem>>, vector<1x32x128xbf16>
    %145 = vector.shape_cast %144 : vector<1x32x128xbf16> to vector<32x128xbf16>
    %cst_46 = arith.constant dense<0.000000e+00> : vector<24x128xf32>
    %146 = tpu.matmul %143, %145, %cst_46 {dimension_numbers = #tpu.dot_dimension_numbers<[1], [0], [0], [1], [0, 0, 1, 1], [], []>} : vector<24x32xbf16>, vector<32x128xbf16>, vector<24x128xf32> -> vector<24x128xf32>
    %c0_47 = arith.constant 0 : index
    %c0_48 = arith.constant 0 : index
    %c0_49 = arith.constant 0 : index
    %147 = vector.load %arg10[%c0_47, %c0_48, %c0_49] : memref<1x1x128xf32, #tpu.memory_space<vmem>>, vector<1x1x128xf32>
    %148 = vector.shape_cast %147 : vector<1x1x128xf32> to vector<1x128xf32>
    %149 = vector.broadcast %148 : vector<1x128xf32> to vector<24x128xf32>
    %150 = arith.addf %146, %149 : vector<24x128xf32>
    %cst_50 = arith.constant 5.000000e-01 : f32
    %151 = vector.broadcast %cst_50 : f32 to vector<24x128xf32>
    %152 = arith.mulf %151, %150 : vector<24x128xf32>
    %cst_51 = arith.constant 4.471500e-02 : f32
    %153 = vector.broadcast %cst_51 : f32 to vector<24x128xf32>
    %154 = arith.mulf %153, %150 : vector<24x128xf32>
    %155 = arith.mulf %154, %150 : vector<24x128xf32>
    %156 = arith.mulf %155, %150 : vector<24x128xf32>
    %157 = arith.addf %150, %156 : vector<24x128xf32>
    %cst_52 = arith.constant 0.797884583 : f32
    %158 = vector.broadcast %cst_52 : f32 to vector<24x128xf32>
    %159 = arith.mulf %158, %157 : vector<24x128xf32>
    %160 = math.tanh %159 : vector<24x128xf32>
    %cst_53 = arith.constant 1.000000e+00 : f32
    %161 = vector.broadcast %cst_53 : f32 to vector<24x128xf32>
    %162 = arith.addf %161, %160 : vector<24x128xf32>
    %163 = arith.mulf %152, %162 : vector<24x128xf32>
    %164 = arith.truncf %163 : vector<24x128xf32> to vector<24x128xbf16>
    %c0_54 = arith.constant 0 : index
    %c0_55 = arith.constant 0 : index
    %c0_56 = arith.constant 0 : index
    %165 = vector.load %arg11[%c0_54, %c0_55, %c0_56] : memref<1x128x32xbf16, #tpu.memory_space<vmem>>, vector<1x128x32xbf16>
    %166 = vector.shape_cast %165 : vector<1x128x32xbf16> to vector<128x32xbf16>
    %cst_57 = arith.constant dense<0.000000e+00> : vector<24x32xf32>
    %167 = tpu.matmul %164, %166, %cst_57 {dimension_numbers = #tpu.dot_dimension_numbers<[1], [0], [0], [1], [0, 0, 1, 1], [], []>} : vector<24x128xbf16>, vector<128x32xbf16>, vector<24x32xf32> -> vector<24x32xf32>
    %c0_58 = arith.constant 0 : index
    %c0_59 = arith.constant 0 : index
    %c0_60 = arith.constant 0 : index
    %168 = vector.load %arg12[%c0_58, %c0_59, %c0_60] : memref<1x1x32xf32, #tpu.memory_space<vmem>>, vector<1x1x32xf32>
    %169 = vector.shape_cast %168 : vector<1x1x32xf32> to vector<1x32xf32>
    %170 = vector.broadcast %169 : vector<1x32xf32> to vector<24x32xf32>
    %171 = arith.addf %167, %170 : vector<24x32xf32>
    %172 = arith.addf %116, %171 : vector<24x32xf32>
    %c0_61 = arith.constant 0 : index
    %c0_62 = arith.constant 0 : index
    %c0_63 = arith.constant 0 : index
    %173 = vector.load %arg13[%c0_61, %c0_62, %c0_63] : memref<1x24x32xf32, #tpu.memory_space<vmem>>, vector<1x24x32xf32>
    %174 = vector.shape_cast %173 : vector<1x24x32xf32> to vector<24x32xf32>
    %175 = vector.shape_cast %172 : vector<24x32xf32> to vector<1x24x32xf32>
    tpu.vector_store %arg13[%c0_61, %c0_62, %c0_63], %175 {strides = array<i32>} : memref<1x24x32xf32, #tpu.memory_space<vmem>>, vector<1x24x32xf32>,
    return
  }
  func.func @transform_0(%arg0: i32, %arg1: i32) -> (i32, i32, i32) {
    %c0_i32 = arith.constant 0 : i32
    %c0_i32_0 = arith.constant 0 : i32
    %c0_i32_1 = arith.constant 0 : i32
    return %arg0, %c0_i32, %c0_i32_0 : i32, i32, i32
  }
  func.func @transform_1(%arg0: i32, %arg1: i32) -> (i32, i32, i32) {
    %c0_i32 = arith.constant 0 : i32
    %c0_i32_0 = arith.constant 0 : i32
    %c0_i32_1 = arith.constant 0 : i32
    return %arg1, %c0_i32, %c0_i32_0 : i32, i32, i32
  }
  func.func @transform_2(%arg0: i32, %arg1: i32) -> (i32, i32, i32) {
    %c0_i32 = arith.constant 0 : i32
    %c0_i32_0 = arith.constant 0 : i32
    %c0_i32_1 = arith.constant 0 : i32
    return %arg1, %c0_i32, %c0_i32_0 : i32, i32, i32
  }
  func.func @transform_3(%arg0: i32, %arg1: i32) -> (i32, i32, i32) {
    %c0_i32 = arith.constant 0 : i32
    %c0_i32_0 = arith.constant 0 : i32
    %c0_i32_1 = arith.constant 0 : i32
    return %arg1, %c0_i32, %c0_i32_0 : i32, i32, i32
  }
  func.func @transform_4(%arg0: i32, %arg1: i32) -> (i32, i32, i32) {
    %c0_i32 = arith.constant 0 : i32
    %c0_i32_0 = arith.constant 0 : i32
    %c0_i32_1 = arith.constant 0 : i32
    return %arg1, %c0_i32, %c0_i32_0 : i32, i32, i32
  }
  func.func @transform_5(%arg0: i32, %arg1: i32) -> (i32, i32, i32) {
    %c0_i32 = arith.constant 0 : i32
    %c0_i32_0 = arith.constant 0 : i32
    %c0_i32_1 = arith.constant 0 : i32
    return %arg1, %c0_i32, %c0_i32_0 : i32, i32, i32
  }
  func.func @transform_6(%arg0: i32, %arg1: i32) -> (i32, i32, i32) {
    %c0_i32 = arith.constant 0 : i32
    %c0_i32_0 = arith.constant 0 : i32
    %c0_i32_1 = arith.constant 0 : i32
    return %arg1, %c0_i32, %c0_i32_0 : i32, i32, i32
  }
  func.func @transform_7(%arg0: i32, %arg1: i32) -> (i32, i32, i32) {
    %c0_i32 = arith.constant 0 : i32
    %c0_i32_0 = arith.constant 0 : i32
    %c0_i32_1 = arith.constant 0 : i32
    return %arg1, %c0_i32, %c0_i32_0 : i32, i32, i32
  }
  func.func @transform_8(%arg0: i32, %arg1: i32) -> (i32, i32, i32) {
    %c0_i32 = arith.constant 0 : i32
    %c0_i32_0 = arith.constant 0 : i32
    %c0_i32_1 = arith.constant 0 : i32
    return %arg1, %c0_i32, %c0_i32_0 : i32, i32, i32
  }
  func.func @transform_9(%arg0: i32, %arg1: i32) -> (i32, i32, i32) {
    %c0_i32 = arith.constant 0 : i32
    %c0_i32_0 = arith.constant 0 : i32
    %c0_i32_1 = arith.constant 0 : i32
    return %arg1, %c0_i32, %c0_i32_0 : i32, i32, i32
  }
  func.func @transform_10(%arg0: i32, %arg1: i32) -> (i32, i32, i32) {
    %c0_i32 = arith.constant 0 : i32
    %c0_i32_0 = arith.constant 0 : i32
    %c0_i32_1 = arith.constant 0 : i32
    return %arg1, %c0_i32, %c0_i32_0 : i32, i32, i32
  }
  func.func @transform_11(%arg0: i32, %arg1: i32) -> (i32, i32, i32) {
    %c0_i32 = arith.constant 0 : i32
    %c0_i32_0 = arith.constant 0 : i32
    %c0_i32_1 = arith.constant 0 : i32
    return %arg0, %c0_i32, %c0_i32_0 : i32, i32, i32
  }
  func.func @transform_12(%arg0: i32, %arg1: i32) -> (i32, i32, i32, i32, i32) {
    %c0_i32 = arith.constant 0 : i32
    %c0_i32_0 = arith.constant 0 : i32
    %c0_i32_1 = arith.constant 0 : i32
    %c0_i32_2 = arith.constant 0 : i32
    return %arg0, %arg1, %c0_i32, %c0_i32_0, %c0_i32_1 : i32, i32, i32, i32, i32
  }
}

</mosaic_0001>

<llo_original>
// kernel: tpu_custom_call.1
$region0: #{tpu_custom_call.1}
  #allocation0 [shape = 'u32[]', space=smem, size = 0x4, offset = 0x4, fixed_abs, tag = 'smem constant byte address 0x4 - core index']
  #allocation1 [shape = 'u32[144,128]{1,0:T(1,128)}', space=vmem, size = 0x12000, scoped, tag = 'internal scratch']
  %s0 = inlined_call_operand.vmem [shape: f32[2,24,32], index: 0, kind: input, shape index: {}]
  %s1 = inlined_call_operand.vmem [shape: f32[2,2,32], index: 1, kind: input, shape index: {}]
  %s2 = inlined_call_operand.vmem [shape: bf16[2,32,96], index: 2, kind: input, shape index: {}]
  %s3 = inlined_call_operand.vmem [shape: f32[2,1,96], index: 3, kind: input, shape index: {}]
  %s4 = inlined_call_operand.vmem [shape: bf16[2,32,32], index: 4, kind: input, shape index: {}]
  %s5 = inlined_call_operand.vmem [shape: f32[2,1,32], index: 5, kind: input, shape index: {}]
  %s6 = inlined_call_operand.vmem [shape: f32[2,2,32], index: 6, kind: input, shape index: {}]
  %s7 = inlined_call_operand.vmem [shape: bf16[2,32,128], index: 7, kind: input, shape index: {}]
  %s8 = inlined_call_operand.vmem [shape: f32[2,1,128], index: 8, kind: input, shape index: {}]
  %s9 = inlined_call_operand.vmem [shape: bf16[2,128,32], index: 9, kind: input, shape index: {}]
  %s10 = inlined_call_operand.vmem [shape: f32[2,1,32], index: 10, kind: input, shape index: {}]
  %s11 = inlined_call_operand.hbm [shape: f32[2,24,32], index: 11, kind: output, shape index: {0}]
  %s12 = inlined_call_operand.hbm [shape: f32[2,2,4,24,24], index: 12, kind: output, shape index: {1}]
  %13 = xla_tuple %s11, %s12
  %s14 = sld [smem:[#allocation0]]
  $region89: #{tpu_custom_call.1} parent=0
    _
  %s16 = ssub.s32 1, %s14
  %s17 = scalar_select 0, %s16, %s14
  $region1: #{tpu_custom_call.1} parent=0
    #allocation2 [shape = 'u8[24576]{0}', space=vmem, size = 0x6000, scoped, tag = 'output window, operand 0']
    #allocation3 [shape = 's32[2]{0}', space=sflag, size = 0x8, scoped, tag = 'scoped memory for tpu_custom_call.1']
    #allocation4 [shape = 'u8[98304]{0}', space=vmem, size = 0x18000, scoped, tag = 'output window, operand 1']
    #allocation5 [shape = 's32[2]{0}', space=sflag, size = 0x8, scoped, tag = 'scoped memory for tpu_custom_call.1']
    %18 = vsyncpa [#allocation3], 0
    %s19 = scalar_lea.sflag [#allocation3], 1
    %20 = vsyncpa %s19, 0
    %21 = vsyncpa [#allocation5], 0
    %s22 = scalar_lea.sflag [#allocation5], 1
    %23 = vsyncpa %s22, 0
    loop: start=0, step=1, limit=6
    $region2: #{tpu_custom_call.1} parent=1 // loop_pre_header
      _
    $region3: #{tpu_custom_call.1} parent=1 // loop_header
      %s25 = sphi 0, %s29
      %p26 = scmp.ge.s32.totalorder %s25, 6
      %s32 = sphi 0, %s44
      %s33 = sphi 0, %s40
      %s34 = sphi 0, %s32
      %s35 = sphi 0, %s33
      %s36 = sphi 0, %s34
      %s37 = sphi 0, %s35
      %s47 = sphi 0, %s49
      %s50 = sphi 0, %s47
      %s51 = sphi 0, %s50
      %s67 = sphi 0, %s51
      %s73 = sphi 0, %s75
      %s76 = sphi 0, %s73
      %s77 = sphi 0, %s76
      %s93 = sphi 0, %s77
      %s99 = sphi 0, %s101
      %s102 = sphi 0, %s99
      %s103 = sphi 0, %s102
      %s119 = sphi 0, %s103
      %s125 = sphi 0, %s127
      %s128 = sphi 0, %s125
      %s129 = sphi 0, %s128
      %s145 = sphi 0, %s129
      %s151 = sphi 0, %s153
      %s154 = sphi 0, %s151
      %s155 = sphi 0, %s154
      %s171 = sphi 0, %s155
      %s177 = sphi 0, %s179
      %s180 = sphi 0, %s177
      %s181 = sphi 0, %s180
      %s197 = sphi 0, %s181
      %s203 = sphi 0, %s205
      %s206 = sphi 0, %s203
      %s207 = sphi 0, %s206
      %s223 = sphi 0, %s207
      %s229 = sphi 0, %s231
      %s232 = sphi 0, %s229
      %s233 = sphi 0, %s232
      %s249 = sphi 0, %s233
      %s255 = sphi 0, %s257
      %s258 = sphi 0, %s255
      %s259 = sphi 0, %s258
      %s275 = sphi 0, %s259
      %s281 = sphi 0, %s283
      %s284 = sphi 0, %s281
      %s285 = sphi 0, %s284
      %s301 = sphi 0, %s285
      %s307 = sphi 0, %s309
      %s310 = sphi 0, %s307
      %s311 = sphi 0, %s310
      %s327 = sphi 0, %s311
      %s333 = sphi 0, %s335
      %s336 = sphi 0, %s333
      %s337 = sphi 0, %s336
      %s353 = sphi 0, %s337
      %s361 = sphi 0, %s363
      %s364 = sphi 0, %s361
      %s365 = sphi 0, %s364
      %s381 = sphi 0, %s365
    $region4: #{tpu_custom_call.1} parent=1 // loop_header_branch
      %28 = sbr.rel (%p26) target = $region8
    $region5: #{tpu_custom_call.1} parent=1 // loop_body
      %s30 = ssub.s32 %s25, 1
      %s31 = ssub.s32 %s25, 2
      %s38 = sadd.s32 1, %s33
      %p39 = scmp.ge.s32.totalorder %s38, 2
      %s40 = scalar_select %p39, 0, %s38
      %s41 = sadd.s32 1, %s32
      %s42 = scalar_select %p39, %s41, %s32
      %p43 = scmp.ge.s32.totalorder %s42, 2
      %s44 = scalar_select %p43, 0, %s42
      %s45 = ssub.s32 %s32, %s44
      %p46 = scmp.eq.s32.totalorder %s45, 0
      %s48 = sadd.s32 %s47, 1
      %s49 = scalar_select %p46, %s47, %s48
      %p52 = pneg %p46
      %p53 = scmp.eq.s32.totalorder %s25, 3
      %p54 = por %p52, %p53
      %p55 = scmp.ne.s32.totalorder %s47, %s50
      %p56 = scmp.eq.s32.totalorder %s25, 0
      %p57 = por %p55, %p56
      %p58 = scmp.ne.s32.totalorder %s47, %s50
      %p59 = scmp.eq.s32.totalorder %s30, 3
      %p60 = por %p58, %p59
      %p61 = scmp.ne.s32.totalorder %s50, %s51
      %p62 = scmp.eq.s32.totalorder %s30, 0
      %p63 = por %p61, %p62
      %p64 = scmp.ne.s32.totalorder %s50, %s51
      %p65 = scmp.eq.s32.totalorder %s31, 3
      %p66 = por %p64, %p65
      %p68 = scmp.ne.s32.totalorder %s51, %s67
      %p69 = scmp.eq.s32.totalorder %s31, 0
      %p70 = por %p68, %p69
      %s71 = ssub.s32 %s33, %s40
      %p72 = scmp.eq.s32.totalorder %s71, 0
      %s74 = sadd.s32 %s73, 1
      %s75 = scalar_select %p72, %s73, %s74
      %p78 = pneg %p72
      %p79 = scmp.eq.s32.totalorder %s25, 3
      %p80 = por %p78, %p79
      %p81 = scmp.ne.s32.totalorder %s73, %s76
      %p82 = scmp.eq.s32.totalorder %s25, 0
      %p83 = por %p81, %p82
      %p84 = scmp.ne.s32.totalorder %s73, %s76
      %p85 = scmp.eq.s32.totalorder %s30, 3
      %p86 = por %p84, %p85
      %p87 = scmp.ne.s32.totalorder %s76, %s77
      %p88 = scmp.eq.s32.totalorder %s30, 0
      %p89 = por %p87, %p88
      %p90 = scmp.ne.s32.totalorder %s76, %s77
      %p91 = scmp.eq.s32.totalorder %s31, 3
      %p92 = por %p90, %p91
      %p94 = scmp.ne.s32.totalorder %s77, %s93
      %p95 = scmp.eq.s32.totalorder %s31, 0
      %p96 = por %p94, %p95
      %s97 = ssub.s32 %s33, %s40
      %p98 = scmp.eq.s32.totalorder %s97, 0
      %s100 = sadd.s32 %s99, 1
      %s101 = scalar_select %p98, %s99, %s100
      %p104 = pneg %p98
      %p105 = scmp.eq.s32.totalorder %s25, 3
      %p106 = por %p104, %p105
      %p107 = scmp.ne.s32.totalorder %s99, %s102
      %p108 = scmp.eq.s32.totalorder %s25, 0
      %p109 = por %p107, %p108
      %p110 = scmp.ne.s32.totalorder %s99, %s102
      %p111 = scmp.eq.s32.totalorder %s30, 3
      %p112 = por %p110, %p111
      %p113 = scmp.ne.s32.totalorder %s102, %s103
      %p114 = scmp.eq.s32.totalorder %s30, 0
      %p115 = por %p113, %p114
      %p116 = scmp.ne.s32.totalorder %s102, %s103
      %p117 = scmp.eq.s32.totalorder %s31, 3
      %p118 = por %p116, %p117
      %p120 = scmp.ne.s32.totalorder %s103, %s119
      %p121 = scmp.eq.s32.totalorder %s31, 0
      %p122 = por %p120, %p121
      %s123 = ssub.s32 %s33, %s40
      %p124 = scmp.eq.s32.totalorder %s123, 0
      %s126 = sadd.s32 %s125, 1
      %s127 = scalar_select %p124, %s125, %s126
      %p130 = pneg %p124
      %p131 = scmp.eq.s32.totalorder %s25, 3
      %p132 = por %p130, %p131
      %p133 = scmp.ne.s32.totalorder %s125, %s128
      %p134 = scmp.eq.s32.totalorder %s25, 0
      %p135 = por %p133, %p134
      %p136 = scmp.ne.s32.totalorder %s125, %s128
      %p137 = scmp.eq.s32.totalorder %s30, 3
      %p138 = por %p136, %p137
      %p139 = scmp.ne.s32.totalorder %s128, %s129
      %p140 = scmp.eq.s32.totalorder %s30, 0
      %p141 = por %p139, %p140
      %p142 = scmp.ne.s32.totalorder %s128, %s129
      %p143 = scmp.eq.s32.totalorder %s31, 3
      %p144 = por %p142, %p143
      %p146 = scmp.ne.s32.totalorder %s129, %s145
      %p147 = scmp.eq.s32.totalorder %s31, 0
      %p148 = por %p146, %p147
      %s149 = ssub.s32 %s33, %s40
      %p150 = scmp.eq.s32.totalorder %s149, 0
      %s152 = sadd.s32 %s151, 1
      %s153 = scalar_select %p150, %s151, %s152
      %p156 = pneg %p150
      %p157 = scmp.eq.s32.totalorder %s25, 3
      %p158 = por %p156, %p157
      %p159 = scmp.ne.s32.totalorder %s151, %s154
      %p160 = scmp.eq.s32.totalorder %s25, 0
      %p161 = por %p159, %p160
      %p162 = scmp.ne.s32.totalorder %s151, %s154
      %p163 = scmp.eq.s32.totalorder %s30, 3
      %p164 = por %p162, %p163
      %p165 = scmp.ne.s32.totalorder %s154, %s155
      %p166 = scmp.eq.s32.totalorder %s30, 0
      %p167 = por %p165, %p166
      %p168 = scmp.ne.s32.totalorder %s154, %s155
      %p169 = scmp.eq.s32.totalorder %s31, 3
      %p170 = por %p168, %p169
      %p172 = scmp.ne.s32.totalorder %s155, %s171
      %p173 = scmp.eq.s32.totalorder %s31, 0
      %p174 = por %p172, %p173
      %s175 = ssub.s32 %s33, %s40
      %p176 = scmp.eq.s32.totalorder %s175, 0
      %s178 = sadd.s32 %s177, 1
      %s179 = scalar_select %p176, %s177, %s178
      %p182 = pneg %p176
      %p183 = scmp.eq.s32.totalorder %s25, 3
      %p184 = por %p182, %p183
      %p185 = scmp.ne.s32.totalorder %s177, %s180
      %p186 = scmp.eq.s32.totalorder %s25, 0
      %p187 = por %p185, %p186
      %p188 = scmp.ne.s32.totalorder %s177, %s180
      %p189 = scmp.eq.s32.totalorder %s30, 3
      %p190 = por %p188, %p189
      %p191 = scmp.ne.s32.totalorder %s180, %s181
      %p192 = scmp.eq.s32.totalorder %s30, 0
      %p193 = por %p191, %p192
      %p194 = scmp.ne.s32.totalorder %s180, %s181
      %p195 = scmp.eq.s32.totalorder %s31, 3
      %p196 = por %p194, %p195
      %p198 = scmp.ne.s32.totalorder %s181, %s197
      %p199 = scmp.eq.s32.totalorder %s31, 0
      %p200 = por %p198, %p199
      %s201 = ssub.s32 %s33, %s40
      %p202 = scmp.eq.s32.totalorder %s201, 0
      %s204 = sadd.s32 %s203, 1
      %s205 = scalar_select %p202, %s203, %s204
      %p208 = pneg %p202
      %p209 = scmp.eq.s32.totalorder %s25, 3
      %p210 = por %p208, %p209
      %p211 = scmp.ne.s32.totalorder %s203, %s206
      %p212 = scmp.eq.s32.totalorder %s25, 0
      %p213 = por %p211, %p212
      %p214 = scmp.ne.s32.totalorder %s203, %s206
      %p215 = scmp.eq.s32.totalorder %s30, 3
      %p216 = por %p214, %p215
      %p217 = scmp.ne.s32.totalorder %s206, %s207
      %p218 = scmp.eq.s32.totalorder %s30, 0
      %p219 = por %p217, %p218
      %p220 = scmp.ne.s32.totalorder %s206, %s207
      %p221 = scmp.eq.s32.totalorder %s31, 3
      %p222 = por %p220, %p221
      %p224 = scmp.ne.s32.totalorder %s207, %s223
      %p225 = scmp.eq.s32.totalorder %s31, 0
      %p226 = por %p224, %p225
      %s227 = ssub.s32 %s33, %s40
      %p228 = scmp.eq.s32.totalorder %s227, 0
      %s230 = sadd.s32 %s229, 1
      %s231 = scalar_select %p228, %s229, %s230
      %p234 = pneg %p228
      %p235 = scmp.eq.s32.totalorder %s25, 3
      %p236 = por %p234, %p235
      %p237 = scmp.ne.s32.totalorder %s229, %s232
      %p238 = scmp.eq.s32.totalorder %s25, 0
      %p239 = por %p237, %p238
      %p240 = scmp.ne.s32.totalorder %s229, %s232
      %p241 = scmp.eq.s32.totalorder %s30, 3
      %p242 = por %p240, %p241
      %p243 = scmp.ne.s32.totalorder %s232, %s233
      %p244 = scmp.eq.s32.totalorder %s30, 0
      %p245 = por %p243, %p244
      %p246 = scmp.ne.s32.totalorder %s232, %s233
      %p247 = scmp.eq.s32.totalorder %s31, 3
      %p248 = por %p246, %p247
      %p250 = scmp.ne.s32.totalorder %s233, %s249
      %p251 = scmp.eq.s32.totalorder %s31, 0
      %p252 = por %p250, %p251
      %s253 = ssub.s32 %s33, %s40
      %p254 = scmp.eq.s32.totalorder %s253, 0
      %s256 = sadd.s32 %s255, 1
      %s257 = scalar_select %p254, %s255, %s256
      %p260 = pneg %p254
      %p261 = scmp.eq.s32.totalorder %s25, 3
      %p262 = por %p260, %p261
      %p263 = scmp.ne.s32.totalorder %s255, %s258
      %p264 = scmp.eq.s32.totalorder %s25, 0
      %p265 = por %p263, %p264
      %p266 = scmp.ne.s32.totalorder %s255, %s258
      %p267 = scmp.eq.s32.totalorder %s30, 3
      %p268 = por %p266, %p267
      %p269 = scmp.ne.s32.totalorder %s258, %s259
      %p270 = scmp.eq.s32.totalorder %s30, 0
      %p271 = por %p269, %p270
      %p272 = scmp.ne.s32.totalorder %s258, %s259
      %p273 = scmp.eq.s32.totalorder %s31, 3
      %p274 = por %p272, %p273
      %p276 = scmp.ne.s32.totalorder %s259, %s275
      %p277 = scmp.eq.s32.totalorder %s31, 0
      %p278 = por %p276, %p277
      %s279 = ssub.s32 %s33, %s40
      %p280 = scmp.eq.s32.totalorder %s279, 0
      %s282 = sadd.s32 %s281, 1
      %s283 = scalar_select %p280, %s281, %s282
      %p286 = pneg %p280
      %p287 = scmp.eq.s32.totalorder %s25, 3
      %p288 = por %p286, %p287
      %p289 = scmp.ne.s32.totalorder %s281, %s284
      %p290 = scmp.eq.s32.totalorder %s25, 0
      %p291 = por %p289, %p290
      %p292 = scmp.ne.s32.totalorder %s281, %s284
      %p293 = scmp.eq.s32.totalorder %s30, 3
      %p294 = por %p292, %p293
      %p295 = scmp.ne.s32.totalorder %s284, %s285
      %p296 = scmp.eq.s32.totalorder %s30, 0
      %p297 = por %p295, %p296
      %p298 = scmp.ne.s32.totalorder %s284, %s285
      %p299 = scmp.eq.s32.totalorder %s31, 3
      %p300 = por %p298, %p299
      %p302 = scmp.ne.s32.totalorder %s285, %s301
      %p303 = scmp.eq.s32.totalorder %s31, 0
      %p304 = por %p302, %p303
      %s305 = ssub.s32 %s33, %s40
      %p306 = scmp.eq.s32.totalorder %s305, 0
      %s308 = sadd.s32 %s307, 1
      %s309 = scalar_select %p306, %s307, %s308
      %p312 = pneg %p306
      %p313 = scmp.eq.s32.totalorder %s25, 3
      %p314 = por %p312, %p313
      %p315 = scmp.ne.s32.totalorder %s307, %s310
      %p316 = scmp.eq.s32.totalorder %s25, 0
      %p317 = por %p315, %p316
      %p318 = scmp.ne.s32.totalorder %s307, %s310
      %p319 = scmp.eq.s32.totalorder %s30, 3
      %p320 = por %p318, %p319
      %p321 = scmp.ne.s32.totalorder %s310, %s311
      %p322 = scmp.eq.s32.totalorder %s30, 0
      %p323 = por %p321, %p322
      %p324 = scmp.ne.s32.totalorder %s310, %s311
      %p325 = scmp.eq.s32.totalorder %s31, 3
      %p326 = por %p324, %p325
      %p328 = scmp.ne.s32.totalorder %s311, %s327
      %p329 = scmp.eq.s32.totalorder %s31, 0
      %p330 = por %p328, %p329
      %s331 = ssub.s32 %s32, %s44
      %p332 = scmp.eq.s32.totalorder %s331, 0
      %s334 = sadd.s32 %s333, 1
      %s335 = scalar_select %p332, %s333, %s334
      %p338 = pneg %p332
      %p339 = scmp.eq.s32.totalorder %s25, 3
      %p340 = por %p338, %p339
      %p341 = scmp.ne.s32.totalorder %s333, %s336
      %p342 = scmp.eq.s32.totalorder %s25, 0
      %p343 = por %p341, %p342
      %p344 = scmp.ne.s32.totalorder %s333, %s336
      %p345 = scmp.eq.s32.totalorder %s30, 3
      %p346 = por %p344, %p345
      %p347 = scmp.ne.s32.totalorder %s336, %s337
      %p348 = scmp.eq.s32.totalorder %s30, 0
      %p349 = por %p347, %p348
      %p350 = scmp.ne.s32.totalorder %s336, %s337
      %p351 = scmp.eq.s32.totalorder %s31, 3
      %p352 = por %p350, %p351
      %p354 = scmp.ne.s32.totalorder %s337, %s353
      %p355 = scmp.eq.s32.totalorder %s31, 0
      %p356 = por %p354, %p355
      %s357 = ssub.s32 %s32, %s44
      %s358 = ssub.s32 %s33, %s40
      %s359 = sor.u32 %s357, %s358
      %p360 = scmp.eq.s32.totalorder %s359, 0
      %s362 = sadd.s32 %s361, 1
      %s363 = scalar_select %p360, %s361, %s362
      %p366 = pneg %p360
      %p367 = scmp.eq.s32.totalorder %s25, 3
      %p368 = por %p366, %p367
      %p369 = scmp.ne.s32.totalorder %s361, %s364
      %p370 = scmp.eq.s32.totalorder %s25, 0
      %p371 = por %p369, %p370
      %p372 = scmp.ne.s32.totalorder %s361, %s364
      %p373 = scmp.eq.s32.totalorder %s30, 3
      %p374 = por %p372, %p373
      %p375 = scmp.ne.s32.totalorder %s364, %s365
      %p376 = scmp.eq.s32.totalorder %s30, 0
      %p377 = por %p375, %p376
      %p378 = scmp.ne.s32.totalorder %s364, %s365
      %p379 = scmp.eq.s32.totalorder %s31, 3
      %p380 = por %p378, %p379
      %p382 = scmp.ne.s32.totalorder %s365, %s381
      %p383 = scmp.eq.s32.totalorder %s31, 0
      %p384 = por %p382, %p383
      %p385 = scmp.le.s32.totalorder 1, %s25
      %p386 = scmp.lt.s32.totalorder %s25, 5
      %p387 = pnand %p385, %p386
      %p388 = pneg %p387
      // Predicated region
      $region9: #{tpu_custom_call.1} parent=5 // pred_check
        _
      $region10: #{tpu_custom_call.1} parent=5 // pred_check_branch
        %390 = sbr.rel (%p387) target = $region12
      $region11: #{tpu_custom_call.1} parent=5 // pred_region
        %s391 = ssub.s32 %s25, 1
      $region12: #{tpu_custom_call.1} parent=5 // pred_fallthru
        _
      %p392 = scmp.lt.s32.totalorder %s25, 4
      // Predicated region
      $region13: #{tpu_custom_call.1} parent=5 // pred_check
        %p393 = pneg %p392
      $region14: #{tpu_custom_call.1} parent=5 // pred_check_branch
        %395 = sbr.rel (%p393) target = $region16
      $region15: #{tpu_custom_call.1} parent=5 // pred_region
        // Predicated region
        $region17: #{tpu_custom_call.1} parent=15 // pred_check
          %p396 = pneg %p57
        $region18: #{tpu_custom_call.1} parent=15 // pred_check_branch
          %398 = sbr.rel (%p396) target = $region20
        $region19: #{tpu_custom_call.1} parent=15 // pred_region
          %p399 = scmp.lt.s32.totalorder %s32, 1
          %s400 = scalar_select %p399, %s32, 1
          %s401 = smul.addr %s400, 3
          %s402 = smul.addr %s401, 8
          %s403 = scalar_lea.vmem %s0, %s402
        $region20: #{tpu_custom_call.1} parent=15 // pred_fallthru
          _
        // Predicated region
        $region21: #{tpu_custom_call.1} parent=15 // pred_check
          %p404 = pneg %p83
        $region22: #{tpu_custom_call.1} parent=15 // pred_check_branch
          %406 = sbr.rel (%p404) target = $region24
        $region23: #{tpu_custom_call.1} parent=15 // pred_region
          %p407 = scmp.lt.s32.totalorder %s33, 1
          %s408 = scalar_select %p407, %s33, 1
          %s409 = smul.addr %s408, 2
          %s410 = scalar_lea.vmem %s1, %s409
        $region24: #{tpu_custom_call.1} parent=15 // pred_fallthru
          _
        // Predicated region
        $region25: #{tpu_custom_call.1} parent=15 // pred_check
          %p411 = pneg %p109
        $region26: #{tpu_custom_call.1} parent=15 // pred_check_branch
          %413 = sbr.rel (%p411) target = $region28
        $region27: #{tpu_custom_call.1} parent=15 // pred_region
          %p414 = scmp.lt.s32.totalorder %s33, 1
          %s415 = scalar_select %p414, %s33, 1
          %s416 = smul.addr %s415, 4
          %s417 = smul.addr %s416, 4
          %s418 = scalar_lea.vmem %s2, %s417
        $region28: #{tpu_custom_call.1} parent=15 // pred_fallthru
          _
        // Predicated region
        $region29: #{tpu_custom_call.1} parent=15 // pred_check
          %p419 = pneg %p135
        $region30: #{tpu_custom_call.1} parent=15 // pred_check_branch
          %421 = sbr.rel (%p419) target = $region32
        $region31: #{tpu_custom_call.1} parent=15 // pred_region
          %p422 = scmp.lt.s32.totalorder %s33, 1
          %s423 = scalar_select %p422, %s33, 1
          %s424 = scalar_lea.vmem %s3, %s423
        $region32: #{tpu_custom_call.1} parent=15 // pred_fallthru
          _
        // Predicated region
        $region33: #{tpu_custom_call.1} parent=15 // pred_check
          %p425 = pneg %p161
        $region34: #{tpu_custom_call.1} parent=15 // pred_check_branch
          %427 = sbr.rel (%p425) target = $region36
        $region35: #{tpu_custom_call.1} parent=15 // pred_region
          %p428 = scmp.lt.s32.totalorder %s33, 1
          %s429 = scalar_select %p428, %s33, 1
          %s430 = smul.addr %s429, 4
          %s431 = smul.addr %s430, 4
          %s432 = scalar_lea.vmem %s4, %s431
        $region36: #{tpu_custom_call.1} parent=15 // pred_fallthru
          _
        // Predicated region
        $region37: #{tpu_custom_call.1} parent=15 // pred_check
          %p433 = pneg %p187
        $region38: #{tpu_custom_call.1} parent=15 // pred_check_branch
          %435 = sbr.rel (%p433) target = $region40
        $region39: #{tpu_custom_call.1} parent=15 // pred_region
          %p436 = scmp.lt.s32.totalorder %s33, 1
          %s437 = scalar_select %p436, %s33, 1
          %s438 = scalar_lea.vmem %s5, %s437
        $region40: #{tpu_custom_call.1} parent=15 // pred_fallthru
          _
        // Predicated region
        $region41: #{tpu_custom_call.1} parent=15 // pred_check
          %p439 = pneg %p213
        $region42: #{tpu_custom_call.1} parent=15 // pred_check_branch
          %441 = sbr.rel (%p439) target = $region44
        $region43: #{tpu_custom_call.1} parent=15 // pred_region
          %p442 = scmp.lt.s32.totalorder %s33, 1
          %s443 = scalar_select %p442, %s33, 1
          %s444 = smul.addr %s443, 2
          %s445 = scalar_lea.vmem %s6, %s444
        $region44: #{tpu_custom_call.1} parent=15 // pred_fallthru
          _
        // Predicated region
        $region45: #{tpu_custom_call.1} parent=15 // pred_check
          %p446 = pneg %p239
        $region46: #{tpu_custom_call.1} parent=15 // pred_check_branch
          %448 = sbr.rel (%p446) target = $region48
        $region47: #{tpu_custom_call.1} parent=15 // pred_region
          %p449 = scmp.lt.s32.totalorder %s33, 1
          %s450 = scalar_select %p449, %s33, 1
          %s451 = smul.addr %s450, 4
          %s452 = smul.addr %s451, 4
          %s453 = scalar_lea.vmem %s7, %s452
        $region48: #{tpu_custom_call.1} parent=15 // pred_fallthru
          _
        // Predicated region
        $region49: #{tpu_custom_call.1} parent=15 // pred_check
          %p454 = pneg %p265
        $region50: #{tpu_custom_call.1} parent=15 // pred_check_branch
          %456 = sbr.rel (%p454) target = $region52
        $region51: #{tpu_custom_call.1} parent=15 // pred_region
          %p457 = scmp.lt.s32.totalorder %s33, 1
          %s458 = scalar_select %p457, %s33, 1
          %s459 = scalar_lea.vmem %s8, %s458
        $region52: #{tpu_custom_call.1} parent=15 // pred_fallthru
          _
        // Predicated region
        $region53: #{tpu_custom_call.1} parent=15 // pred_check
          %p460 = pneg %p291
        $region54: #{tpu_custom_call.1} parent=15 // pred_check_branch
          %462 = sbr.rel (%p460) target = $region56
        $region55: #{tpu_custom_call.1} parent=15 // pred_region
          %p463 = scmp.lt.s32.totalorder %s33, 1
          %s464 = scalar_select %p463, %s33, 1
          %s465 = smul.addr %s464, 16
          %s466 = smul.addr %s465, 4
          %s467 = scalar_lea.vmem %s9, %s466
        $region56: #{tpu_custom_call.1} parent=15 // pred_fallthru
          _
        // Predicated region
        $region57: #{tpu_custom_call.1} parent=15 // pred_check
          %p468 = pneg %p317
        $region58: #{tpu_custom_call.1} parent=15 // pred_check_branch
          %470 = sbr.rel (%p468) target = $region60
        $region59: #{tpu_custom_call.1} parent=15 // pred_region
          %p471 = scmp.lt.s32.totalorder %s33, 1
          %s472 = scalar_select %p471, %s33, 1
          %s473 = scalar_lea.vmem %s10, %s472
        $region60: #{tpu_custom_call.1} parent=15 // pred_fallthru
          _
      $region16: #{tpu_custom_call.1} parent=5 // pred_fallthru
        _
      %p474 = scmp.le.s32.totalorder 1, %s25
      %p475 = scmp.lt.s32.totalorder %s25, 5
      %p476 = pnand %p474, %p475
      %p477 = pneg %p476
      // Predicated region
      $region61: #{tpu_custom_call.1} parent=5 // pred_check
        _
      $region62: #{tpu_custom_call.1} parent=5 // pred_check_branch
        %479 = sbr.rel (%p476) target = $region64
      $region63: #{tpu_custom_call.1} parent=5 // pred_region
        %s480 = ssub.s32 %s25, 1
        %p481 = scmp.lt.s32.totalorder %s34, 1
        %s482 = scalar_select %p481, %s34, 1
        %s483 = smul.addr %s482, 3
        %s484 = smul.addr %s483, 8
        %s485 = scalar_lea.vmem %s0, %s484
        %p486 = pneg %p63
        %p487 = pneg %p60
        %p488 = scmp.lt.s32.totalorder %s35, 1
        %s489 = scalar_select %p488, %s35, 1
        %s490 = smul.addr %s489, 2
        %s491 = scalar_lea.vmem %s1, %s490
        %p492 = pneg %p89
        %p493 = pneg %p86
        %p494 = scmp.lt.s32.totalorder %s35, 1
        %s495 = scalar_select %p494, %s35, 1
        %s496 = smul.addr %s495, 4
        %s497 = smul.addr %s496, 4
        %s498 = scalar_lea.vmem %s2, %s497
        %p499 = pneg %p115
        %p500 = pneg %p112
        %p501 = scmp.lt.s32.totalorder %s35, 1
        %s502 = scalar_select %p501, %s35, 1
        %s503 = scalar_lea.vmem %s3, %s502
        %p504 = pneg %p141
        %p505 = pneg %p138
        %p506 = scmp.lt.s32.totalorder %s35, 1
        %s507 = scalar_select %p506, %s35, 1
        %s508 = smul.addr %s507, 4
        %s509 = smul.addr %s508, 4
        %s510 = scalar_lea.vmem %s4, %s509
        %p511 = pneg %p167
        %p512 = pneg %p164
        %p513 = scmp.lt.s32.totalorder %s35, 1
        %s514 = scalar_select %p513, %s35, 1
        %s515 = scalar_lea.vmem %s5, %s514
        %p516 = pneg %p193
        %p517 = pneg %p190
        %p518 = scmp.lt.s32.totalorder %s35, 1
        %s519 = scalar_select %p518, %s35, 1
        %s520 = smul.addr %s519, 2
        %s521 = scalar_lea.vmem %s6, %s520
        %p522 = pneg %p219
        %p523 = pneg %p216
        %p524 = scmp.lt.s32.totalorder %s35, 1
        %s525 = scalar_select %p524, %s35, 1
        %s526 = smul.addr %s525, 4
        %s527 = smul.addr %s526, 4
        %s528 = scalar_lea.vmem %s7, %s527
        %p529 = pneg %p245
        %p530 = pneg %p242
        %p531 = scmp.lt.s32.totalorder %s35, 1
        %s532 = scalar_select %p531, %s35, 1
        %s533 = scalar_lea.vmem %s8, %s532
        %p534 = pneg %p271
        %p535 = pneg %p268
        %p536 = scmp.lt.s32.totalorder %s35, 1
        %s537 = scalar_select %p536, %s35, 1
        %s538 = smul.addr %s537, 16
        %s539 = smul.addr %s538, 4
        %s540 = scalar_lea.vmem %s9, %s539
        %p541 = pneg %p297
        %p542 = pneg %p294
        %p543 = scmp.lt.s32.totalorder %s35, 1
        %s544 = scalar_select %p543, %s35, 1
        %s545 = scalar_lea.vmem %s10, %s544
        %p546 = pneg %p323
        %p547 = pneg %p320
        %p548 = pneg %p349
        %p549 = pneg %p346
        %s550 = sand.u32 %s336, 1
        %s551 = scalar_lea.sflag [#allocation3], %s550
        %s552 = sand.u32 %s336, 1
        %s553 = smul.addr %s552, 24
        %s554 = scalar_lea.vmem [#allocation2], %s553
        %p555 = pneg %p377
        %p556 = pneg %p374
        %s557 = sand.u32 %s364, 1
        %s558 = scalar_lea.sflag [#allocation5], %s557
        %s559 = sand.u32 %s364, 1
        %s560 = smul.addr %s559, 96
        %s561 = scalar_lea.vmem [#allocation4], %s560
        %p562 = scmp.lt.s32.totalorder %s34, 1
        %s563 = scalar_select %p562, %s34, 1
        %s564 = smul.addr %s563, 3
        %s565 = smul.addr %s564, 8
        %s566 = scalar_lea.vmem %s0, %s565
        %p567 = scmp.lt.s32.totalorder %s35, 1
        %s568 = scalar_select %p567, %s35, 1
        %s569 = smul.addr %s568, 2
        %s570 = scalar_lea.vmem %s1, %s569
        %p571 = scmp.lt.s32.totalorder %s35, 1
        %s572 = scalar_select %p571, %s35, 1
        %s573 = smul.addr %s572, 4
        %s574 = smul.addr %s573, 4
        %s575 = scalar_lea.vmem %s2, %s574
        %p576 = scmp.lt.s32.totalorder %s35, 1
        %s577 = scalar_select %p576, %s35, 1
        %s578 = scalar_lea.vmem %s3, %s577
        %p579 = scmp.lt.s32.totalorder %s35, 1
        %s580 = scalar_select %p579, %s35, 1
        %s581 = smul.addr %s580, 4
        %s582 = smul.addr %s581, 4
        %s583 = scalar_lea.vmem %s4, %s582
        %p584 = scmp.lt.s32.totalorder %s35, 1
        %s585 = scalar_select %p584, %s35, 1
        %s586 = scalar_lea.vmem %s5, %s585
        %p587 = scmp.lt.s32.totalorder %s35, 1
        %s588 = scalar_select %p587, %s35, 1
        %s589 = smul.addr %s588, 2
        %s590 = scalar_lea.vmem %s6, %s589
        %p591 = scmp.lt.s32.totalorder %s35, 1
        %s592 = scalar_select %p591, %s35, 1
        %s593 = smul.addr %s592, 4
        %s594 = smul.addr %s593, 4
        %s595 = scalar_lea.vmem %s7, %s594
        %p596 = scmp.lt.s32.totalorder %s35, 1
        %s597 = scalar_select %p596, %s35, 1
        %s598 = scalar_lea.vmem %s8, %s597
        %p599 = scmp.lt.s32.totalorder %s35, 1
        %s600 = scalar_select %p599, %s35, 1
        %s601 = smul.addr %s600, 16
        %s602 = smul.addr %s601, 4
        %s603 = scalar_lea.vmem %s9, %s602
        %p604 = scmp.lt.s32.totalorder %s35, 1
        %s605 = scalar_select %p604, %s35, 1
        %s606 = scalar_lea.vmem %s10, %s605
        %p608 = scmp.eq.s32.totalorder %s35, 0
        // Predicated region
        $region65: #{tpu_custom_call.1} parent=63 // pred_check
          %p609 = pneg %p608
        $region66: #{tpu_custom_call.1} parent=63 // pred_check_branch
          %611 = sbr.rel (%p609) target = $region68
        $region67: #{tpu_custom_call.1} parent=63 // pred_region
          %v612 = vld [vmem:[%s566] sm:$0xff]
          %v613 = vld [vmem:[%s566 + $0x8] sm:$0xff]
          %v614 = vld [vmem:[%s566 + $0x10] sm:$0xff]
          %vm615 = vcmask 261120
          %616 = vst.msk [vmem:[%s554] sm:$0xff] %vm615, %v612
          %617 = vst.msk [vmem:[%s554 + $0x8] sm:$0xff] %vm615, %v613
          %618 = vst.msk [vmem:[%s554 + $0x10] sm:$0xff] %vm615, %v614
        $region68: #{tpu_custom_call.1} parent=63 // pred_fallthru
          _
        %v619 = vld [vmem:[%s554] sm:$0xff]
        %v620 = vld [vmem:[%s554 + $0x8] sm:$0xff]
        %v621 = vld [vmem:[%s554 + $0x10] sm:$0xff]
        %v622 = vld [vmem:[%s570] sm:$0x3]
        %vm623 = vcmask 261120
        %v624 = vsel %vm623, %v619, 0.0
        %625 = vadd.xlane.f32.xlu0 %v624
        %v626 = vpop.xlane.xlu0 %625
        %v627 = vsel %vm623, %v620, 0.0
        %628 = vadd.xlane.f32.xlu0 %v627
        %v629 = vpop.xlane.xlu0 %628
        %v630 = vsel %vm623, %v621, 0.0
        %631 = vadd.xlane.f32.xlu0 %v630
        %v632 = vpop.xlane.xlu0 %631
        %v633 = vrcp.pop 32.0
        %v634 = vmul.f32 %v626, %v633
        %v635 = vmul.f32 %v629, %v633
        %v636 = vmul.f32 %v632, %v633
        %v637 = vsub.f32 %v619, %v634
        %v638 = vsub.f32 %v620, %v635
        %v639 = vsub.f32 %v621, %v636
        %v640 = vmul.f32 %v637, %v637
        %v641 = vmul.f32 %v638, %v638
        %v642 = vmul.f32 %v639, %v639
        %v643 = vsel %vm623, %v640, 0.0
        %644 = vadd.xlane.f32.xlu0 %v643
        %v645 = vpop.xlane.xlu0 %644
        %v646 = vsel %vm623, %v641, 0.0
        %647 = vadd.xlane.f32.xlu0 %v646
        %v648 = vpop.xlane.xlu0 %647
        %v649 = vsel %vm623, %v642, 0.0
        %650 = vadd.xlane.f32.xlu0 %v649
        %v651 = vpop.xlane.xlu0 %650
        %v652 = vmul.f32 %v645, %v633
        %v653 = vmul.f32 %v648, %v633
        %v654 = vmul.f32 %v651, %v633
        %v655 = vadd.f32 %v652, 1e-06
        %v656 = vadd.f32 %v653, 1e-06
        %v657 = vadd.f32 %v654, 1e-06
        %v658 = vrsqrt.pop %v655
        %v659 = vrsqrt.pop %v656
        %v660 = vrsqrt.pop %v657
        %v661 = vmul.f32 %v637, %v658
        %v662 = vmul.f32 %v638, %v659
        %v663 = vmul.f32 %v639, %v660
        %v664 = vlaneseq
        %v665 = vshrl.u32 %v664, 7
        %v666 = vsub.s32 0, %v665
        %v667 = vrot.slane %v622, %v666
        %v668 = vmul.f32 %v661, %v667
        %v669 = vmul.f32 %v662, %v667
        %v670 = vmul.f32 %v663, %v667
        %v671 = vlaneseq
        %v672 = vshrl.u32 %v671, 7
        %v673 = vsub.s32 1, %v672
        %v674 = vrot.slane %v622, %v673
        %v675 = vadd.f32 %v668, %v674
        %v676 = vadd.f32 %v669, %v674
        %v677 = vadd.f32 %v670, %v674
        %v678 = vpack.c.bf16 %v676, %v675
        %v679 = vpack.c.bf16 %v677, %v677
        %v680 = vld [vmem:[%s575] sm:$0xf]
        %v681 = vld [vmem:[%s575 + $0x4] sm:$0xf]
        %v682 = vld [vmem:[%s575 + $0x8] sm:$0xf]
        %v683 = vld [vmem:[%s575 + $0xc] sm:$0xf]
        %v684 = vld [vmem:[%s578] sm:$0x1]
        %v686 = vlaneseq
        %v687 = vshrl.u32 %v686, 7
        %v688 = vsub.s32 0, %v687
        %v689 = vrot.slane %v684, %v688
        %v695 = vunpack.c.l.b16 %v680
        %v696 = vunpack.c.l.b16 %v681
        %v697 = vunpack.c.l.b16 %v682
        %v698 = vunpack.c.l.b16 %v683
        %v699 = vpack.c.b16 %v696, %v695
        %v700 = vpack.c.b16 %v698, %v697
        %v704 = vsel %vm623, %v678, 0
        %v707 = vsel %vm623, %v679, 0
        %709 = vmatprep.subr.bf16.mxu0 0
        %710 = vmatpush1.bf16.msra.mxu0 0
        %711 = vmatprep.subr.bf16.mxu0 0
        %712 = vmatpush1.bf16.msra.mxu0 0
        %713 = vmatprep.subr.bf16.mxu0 0
        %714 = vmatpush1.bf16.msra.mxu0 0
        %715 = vmatprep.subr.bf16.mxu0 0
        %716 = vmatpush1.bf16.msra.mxu0 0
        %717 = vmatprep.subr.bf16.mxu0 0
        %718 = vmatpush1.bf16.msra.mxu0 0
        %719 = vmatprep.subr.bf16.mxu0 0
        %720 = vmatpush1.bf16.msra.mxu0 0
        %721 = vmatprep.subr.bf16.mxu0 0
        %722 = vmatpush1.bf16.msra.mxu0 %v700
        %723 = vmatprep.subr.bf16.mxu0 0
        %724 = vmatpush1.bf16.msra.mxu0 %v699
        %725 = vmatprep.subr.bf16.mxu0 0
        %726 = vmatpush2.bf16.msra.mxu0 0
        %727 = vmatprep.subr.bf16.mxu0 0
        %728 = vmatpush2.bf16.msra.mxu0 0
        %729 = vmatprep.subr.bf16.mxu0 0
        %730 = vmatpush2.bf16.msra.mxu0 0
        %731 = vmatprep.subr.bf16.mxu0 0
        %732 = vmatpush2.bf16.msra.mxu0 0
        %733 = vmatprep.subr.bf16.mxu0 0
        %734 = vmatpush2.bf16.msra.mxu0 0
        %735 = vmatprep.subr.bf16.mxu0 0
        %736 = vmatpush2.bf16.msra.mxu0 0
        %737 = vmatprep.subr.bf16.mxu0 0
        %738 = vmatpush2.bf16.msra.mxu0 0
        %739 = vmatprep.subr.bf16.mxu0 0
        %740 = vmatpush2.bf16.msra.mxu0 0
        %741 = vmatprep.mubr.bf16.mxu0 0
        %742 = vmatmul.mubr.bf16.gmra.mxu0 %v704
        %v743 = vpop.f32.mrf.mxu0
        %v744 = vadd.f32 %v689, %v743
        %v745 = vpop.f32.mrf.mxu0
        %v746 = vpop.f32.mrf.mxu0
        %v747 = vadd.f32 %v689, %v746
        %v748 = vpop.f32.mrf.mxu0
        %749 = vmatprep.mubr.bf16.mxu0 0
        %750 = vmatmul.mubr.bf16.gmra.mxu0 %v707
        %v751 = vpop.f32.mrf.mxu0
        %v752 = vadd.f32 %v689, %v751
        %v753 = vpop.f32.mrf.mxu0
        %v754 = vpop.f32.mrf.mxu0
        %v755 = vpop.f32.mrf.mxu0
        %756 = vdwg.mxu0
        %v757 = vpack.c.bf16 %v747, %v744
        %v758 = vpack.c.bf16 %v752, %v752
        %761 = vrot.lane.b32.xlu0 %v757, 120
        %v762 = vpop.permute.xlu0 %761
        %763 = vrot.lane.b32.xlu0 %v758, 120
        %v764 = vpop.permute.xlu0 %763
        %765 = vrot.lane.b32.xlu0 %v757, 112
        %v766 = vpop.permute.xlu0 %765
        %767 = vrot.lane.b32.xlu0 %v758, 112
        %v768 = vpop.permute.xlu0 %767
        %769 = vrot.lane.b32.xlu0 %v757, 104
        %v770 = vpop.permute.xlu0 %769
        %771 = vrot.lane.b32.xlu0 %v758, 104
        %v772 = vpop.permute.xlu0 %771
        %773 = vrot.lane.b32.xlu0 %v757, 96
        %v774 = vpop.permute.xlu0 %773
        %775 = vrot.lane.b32.xlu0 %v758, 96
        %v776 = vpop.permute.xlu0 %775
        %vm777 = vcmask 64512
        %v779 = vsel %vm777, %v757, 0
        %v782 = vsel %vm777, %v758, 0
        %v785 = vsel %vm777, %v774, 0
        %v788 = vsel %vm777, %v776, 0
        %790 = vmatprep.subr.bf16.mxu0 0
        %791 = vmatpush1.bf16.xpose.msra.mxu0 0
        %792 = vmatprep.subr.bf16.mxu0 0
        %793 = vmatpush1.bf16.xpose.msra.mxu0 0
        %794 = vmatprep.subr.bf16.mxu0 0
        %795 = vmatpush1.bf16.xpose.msra.mxu0 0
        %796 = vmatprep.subr.bf16.mxu0 0
        %797 = vmatpush1.bf16.xpose.msra.mxu0 0
        %798 = vmatprep.subr.bf16.mxu0 0
        %799 = vmatpush1.bf16.xpose.msra.mxu0 0
        %800 = vmatprep.subr.bf16.mxu0 0
        %801 = vmatpush1.bf16.xpose.msra.mxu0 0
        %802 = vmatprep.subr.bf16.mxu0 0
        %803 = vmatpush1.bf16.xpose.msra.mxu0 %v788
        %804 = vmatprep.subr.bf16.mxu0 0
        %805 = vmatpush1.bf16.xpose.msra.mxu0 %v785
        %806 = vmatprep.subr.bf16.mxu0 0
        %807 = vmatpush2.bf16.xpose.msra.mxu0 0
        %808 = vmatprep.subr.bf16.mxu0 0
        %809 = vmatpush2.bf16.xpose.msra.mxu0 0
        %810 = vmatprep.subr.bf16.mxu0 0
        %811 = vmatpush2.bf16.xpose.msra.mxu0 0
        %812 = vmatprep.subr.bf16.mxu0 0
        %813 = vmatpush2.bf16.xpose.msra.mxu0 0
        %814 = vmatprep.subr.bf16.mxu0 0
        %815 = vmatpush2.bf16.xpose.msra.mxu0 0
        %816 = vmatprep.subr.bf16.mxu0 0
        %817 = vmatpush2.bf16.xpose.msra.mxu0 0
        %818 = vmatprep.subr.bf16.mxu0 0
        %819 = vmatpush2.bf16.xpose.msra.mxu0 0
        %820 = vmatprep.subr.bf16.mxu0 0
        %821 = vmatpush2.bf16.xpose.msra.mxu0 0
        %822 = vmatprep.mubr.bf16.mxu0 0
        %823 = vmatmul.mubr.bf16.gmra.mxu0 %v779
        %v824 = vpop.f32.mrf.mxu0
        %v825 = vadd.f32 0.0, %v824
        %v826 = vpop.f32.mrf.mxu0
        %v827 = vpop.f32.mrf.mxu0
        %v828 = vadd.f32 0.0, %v827
        %v829 = vpop.f32.mrf.mxu0
        %830 = vmatprep.mubr.bf16.mxu0 0
        %831 = vmatmul.mubr.bf16.gmra.mxu0 %v782
        %v832 = vpop.f32.mrf.mxu0
        %v833 = vadd.f32 0.0, %v832
        %v834 = vpop.f32.mrf.mxu0
        %v835 = vpop.f32.mrf.mxu0
        %v836 = vpop.f32.mrf.mxu0
        %837 = vdwg.mxu0
        %838 = vrot.lane.b32.xlu0 %v762, 96
        %v839 = vpop.permute.xlu0 %838
        %840 = vrot.lane.b32.xlu0 %v764, 96
        %v841 = vpop.permute.xlu0 %840
        %v843 = vsel %vm777, %v762, 0
        %v846 = vsel %vm777, %v764, 0
        %v849 = vsel %vm777, %v839, 0
        %v852 = vsel %vm777, %v841, 0
        %854 = vmatprep.subr.bf16.mxu0 0
        %855 = vmatpush1.bf16.xpose.msra.mxu0 0
        %856 = vmatprep.subr.bf16.mxu0 0
        %857 = vmatpush1.bf16.xpose.msra.mxu0 0
        %858 = vmatprep.subr.bf16.mxu0 0
        %859 = vmatpush1.bf16.xpose.msra.mxu0 0
        %860 = vmatprep.subr.bf16.mxu0 0
        %861 = vmatpush1.bf16.xpose.msra.mxu0 0
        %862 = vmatprep.subr.bf16.mxu0 0
        %863 = vmatpush1.bf16.xpose.msra.mxu0 0
        %864 = vmatprep.subr.bf16.mxu0 0
        %865 = vmatpush1.bf16.xpose.msra.mxu0 0
        %866 = vmatprep.subr.bf16.mxu0 0
        %867 = vmatpush1.bf16.xpose.msra.mxu0 %v852
        %868 = vmatprep.subr.bf16.mxu0 0
        %869 = vmatpush1.bf16.xpose.msra.mxu0 %v849
        %870 = vmatprep.subr.bf16.mxu0 0
        %871 = vmatpush2.bf16.xpose.msra.mxu0 0
        %872 = vmatprep.subr.bf16.mxu0 0
        %873 = vmatpush2.bf16.xpose.msra.mxu0 0
        %874 = vmatprep.subr.bf16.mxu0 0
        %875 = vmatpush2.bf16.xpose.msra.mxu0 0
        %876 = vmatprep.subr.bf16.mxu0 0
        %877 = vmatpush2.bf16.xpose.msra.mxu0 0
        %878 = vmatprep.subr.bf16.mxu0 0
        %879 = vmatpush2.bf16.xpose.msra.mxu0 0
        %880 = vmatprep.subr.bf16.mxu0 0
        %881 = vmatpush2.bf16.xpose.msra.mxu0 0
        %882 = vmatprep.subr.bf16.mxu0 0
        %883 = vmatpush2.bf16.xpose.msra.mxu0 0
        %884 = vmatprep.subr.bf16.mxu0 0
        %885 = vmatpush2.bf16.xpose.msra.mxu0 0
        %886 = vmatprep.mubr.bf16.mxu0 0
        %887 = vmatmul.mubr.bf16.gmra.mxu0 %v843
        %v888 = vpop.f32.mrf.mxu0
        %v889 = vadd.f32 0.0, %v888
        %v890 = vpop.f32.mrf.mxu0
        %v891 = vpop.f32.mrf.mxu0
        %v892 = vadd.f32 0.0, %v891
        %v893 = vpop.f32.mrf.mxu0
        %894 = vmatprep.mubr.bf16.mxu0 0
        %895 = vmatmul.mubr.bf16.gmra.mxu0 %v846
        %v896 = vpop.f32.mrf.mxu0
        %v897 = vadd.f32 0.0, %v896
        %v898 = vpop.f32.mrf.mxu0
        %v899 = vpop.f32.mrf.mxu0
        %v900 = vpop.f32.mrf.mxu0
        %901 = vdwg.mxu0
        %902 = vrot.lane.b32.xlu0 %v766, 96
        %v903 = vpop.permute.xlu0 %902
        %904 = vrot.lane.b32.xlu0 %v768, 96
        %v905 = vpop.permute.xlu0 %904
        %v907 = vsel %vm777, %v766, 0
        %v910 = vsel %vm777, %v768, 0
        %v913 = vsel %vm777, %v903, 0
        %v916 = vsel %vm777, %v905, 0
        %918 = vmatprep.subr.bf16.mxu0 0
        %919 = vmatpush1.bf16.xpose.msra.mxu0 0
        %920 = vmatprep.subr.bf16.mxu0 0
        %921 = vmatpush1.bf16.xpose.msra.mxu0 0
        %922 = vmatprep.subr.bf16.mxu0 0
        %923 = vmatpush1.bf16.xpose.msra.mxu0 0
        %924 = vmatprep.subr.bf16.mxu0 0
        %925 = vmatpush1.bf16.xpose.msra.mxu0 0
        %926 = vmatprep.subr.bf16.mxu0 0
        %927 = vmatpush1.bf16.xpose.msra.mxu0 0
        %928 = vmatprep.subr.bf16.mxu0 0
        %929 = vmatpush1.bf16.xpose.msra.mxu0 0
        %930 = vmatprep.subr.bf16.mxu0 0
        %931 = vmatpush1.bf16.xpose.msra.mxu0 %v916
        %932 = vmatprep.subr.bf16.mxu0 0
        %933 = vmatpush1.bf16.xpose.msra.mxu0 %v913
        %934 = vmatprep.subr.bf16.mxu0 0
        %935 = vmatpush2.bf16.xpose.msra.mxu0 0
        %936 = vmatprep.subr.bf16.mxu0 0
        %937 = vmatpush2.bf16.xpose.msra.mxu0 0
        %938 = vmatprep.subr.bf16.mxu0 0
        %939 = vmatpush2.bf16.xpose.msra.mxu0 0
        %940 = vmatprep.subr.bf16.mxu0 0
        %941 = vmatpush2.bf16.xpose.msra.mxu0 0
        %942 = vmatprep.subr.bf16.mxu0 0
        %943 = vmatpush2.bf16.xpose.msra.mxu0 0
        %944 = vmatprep.subr.bf16.mxu0 0
        %945 = vmatpush2.bf16.xpose.msra.mxu0 0
        %946 = vmatprep.subr.bf16.mxu0 0
        %947 = vmatpush2.bf16.xpose.msra.mxu0 0
        %948 = vmatprep.subr.bf16.mxu0 0
        %949 = vmatpush2.bf16.xpose.msra.mxu0 0
        %950 = vmatprep.mubr.bf16.mxu0 0
        %951 = vmatmul.mubr.bf16.gmra.mxu0 %v907
        %v952 = vpop.f32.mrf.mxu0
        %v953 = vadd.f32 0.0, %v952
        %v954 = vpop.f32.mrf.mxu0
        %v955 = vpop.f32.mrf.mxu0
        %v956 = vadd.f32 0.0, %v955
        %v957 = vpop.f32.mrf.mxu0
        %958 = vmatprep.mubr.bf16.mxu0 0
        %959 = vmatmul.mubr.bf16.gmra.mxu0 %v910
        %v960 = vpop.f32.mrf.mxu0
        %v961 = vadd.f32 0.0, %v960
        %v962 = vpop.f32.mrf.mxu0
        %v963 = vpop.f32.mrf.mxu0
        %v964 = vpop.f32.mrf.mxu0
        %965 = vdwg.mxu0
        %966 = vrot.lane.b32.xlu0 %v770, 96
        %v967 = vpop.permute.xlu0 %966
        %968 = vrot.lane.b32.xlu0 %v772, 96
        %v969 = vpop.permute.xlu0 %968
        %v971 = vsel %vm777, %v770, 0
        %v974 = vsel %vm777, %v772, 0
        %v977 = vsel %vm777, %v967, 0
        %v980 = vsel %vm777, %v969, 0
        %982 = vmatprep.subr.bf16.mxu0 0
        %983 = vmatpush1.bf16.xpose.msra.mxu0 0
        %984 = vmatprep.subr.bf16.mxu0 0
        %985 = vmatpush1.bf16.xpose.msra.mxu0 0
        %986 = vmatprep.subr.bf16.mxu0 0
        %987 = vmatpush1.bf16.xpose.msra.mxu0 0
        %988 = vmatprep.subr.bf16.mxu0 0
        %989 = vmatpush1.bf16.xpose.msra.mxu0 0
        %990 = vmatprep.subr.bf16.mxu0 0
        %991 = vmatpush1.bf16.xpose.msra.mxu0 0
        %992 = vmatprep.subr.bf16.mxu0 0
        %993 = vmatpush1.bf16.xpose.msra.mxu0 0
        %994 = vmatprep.subr.bf16.mxu0 0
        %995 = vmatpush1.bf16.xpose.msra.mxu0 %v980
        %996 = vmatprep.subr.bf16.mxu0 0
        %997 = vmatpush1.bf16.xpose.msra.mxu0 %v977
        %998 = vmatprep.subr.bf16.mxu0 0
        %999 = vmatpush2.bf16.xpose.msra.mxu0 0
        %1000 = vmatprep.subr.bf16.mxu0 0
        %1001 = vmatpush2.bf16.xpose.msra.mxu0 0
        %1002 = vmatprep.subr.bf16.mxu0 0
        %1003 = vmatpush2.bf16.xpose.msra.mxu0 0
        %1004 = vmatprep.subr.bf16.mxu0 0
        %1005 = vmatpush2.bf16.xpose.msra.mxu0 0
        %1006 = vmatprep.subr.bf16.mxu0 0
        %1007 = vmatpush2.bf16.xpose.msra.mxu0 0
        %1008 = vmatprep.subr.bf16.mxu0 0
        %1009 = vmatpush2.bf16.xpose.msra.mxu0 0
        %1010 = vmatprep.subr.bf16.mxu0 0
        %1011 = vmatpush2.bf16.xpose.msra.mxu0 0
        %1012 = vmatprep.subr.bf16.mxu0 0
        %1013 = vmatpush2.bf16.xpose.msra.mxu0 0
        %1014 = vmatprep.mubr.bf16.mxu0 0
        %1015 = vmatmul.mubr.bf16.gmra.mxu0 %v971
        %v1016 = vpop.f32.mrf.mxu0
        %v1017 = vadd.f32 0.0, %v1016
        %v1018 = vpop.f32.mrf.mxu0
        %v1019 = vpop.f32.mrf.mxu0
        %v1020 = vadd.f32 0.0, %v1019
        %v1021 = vpop.f32.mrf.mxu0
        %1022 = vmatprep.mubr.bf16.mxu0 0
        %1023 = vmatmul.mubr.bf16.gmra.mxu0 %v974
        %v1024 = vpop.f32.mrf.mxu0
        %v1025 = vadd.f32 0.0, %v1024
        %v1026 = vpop.f32.mrf.mxu0
        %v1027 = vpop.f32.mrf.mxu0
        %v1028 = vpop.f32.mrf.mxu0
        %1029 = vdwg.mxu0
        %v1030 = vlaneseq
        %v1031 = vand.u32 %v1030, 127
        %vm1032 = vcmp.lt.s32.totalorder %v1031, 18
        %v1033 = vsel %vm1032, 1, 0
        %vm1034 = vcmp.eq.s32.totalorder %v1033, 1
        %v1035 = vsel %vm1034, %v825, -1e+30
        %v1036 = vsel %vm1034, %v828, -1e+30
        %v1037 = vsel %vm1034, %v833, -1e+30
        %v1038 = vsel %vm1034, %v889, -1e+30
        %v1039 = vsel %vm1034, %v892, -1e+30
        %v1040 = vsel %vm1034, %v897, -1e+30
        %v1041 = vsel %vm1034, %v953, -1e+30
        %v1042 = vsel %vm1034, %v956, -1e+30
        %v1043 = vsel %vm1034, %v961, -1e+30
        %v1044 = vsel %vm1034, %v1017, -1e+30
        %v1045 = vsel %vm1034, %v1020, -1e+30
        %v1046 = vsel %vm1034, %v1025, -1e+30
        %vm1047 = vcmask 195584
        %v1048 = vsel %vm1047, %v1035, -inf
        %1049 = vmax.xlane.f32.xlu0 %v1048
        %v1050 = vpop.xlane.xlu0 %1049
        %v1051 = vsel %vm1047, %v1036, -inf
        %1052 = vmax.xlane.f32.xlu0 %v1051
        %v1053 = vpop.xlane.xlu0 %1052
        %v1054 = vsel %vm1047, %v1037, -inf
        %1055 = vmax.xlane.f32.xlu0 %v1054
        %v1056 = vpop.xlane.xlu0 %1055
        %v1057 = vsel %vm1047, %v1038, -inf
        %1058 = vmax.xlane.f32.xlu0 %v1057
        %v1059 = vpop.xlane.xlu0 %1058
        %v1060 = vsel %vm1047, %v1039, -inf
        %1061 = vmax.xlane.f32.xlu0 %v1060
        %v1062 = vpop.xlane.xlu0 %1061
        %v1063 = vsel %vm1047, %v1040, -inf
        %1064 = vmax.xlane.f32.xlu0 %v1063
        %v1065 = vpop.xlane.xlu0 %1064
        %v1066 = vsel %vm1047, %v1041, -inf
        %1067 = vmax.xlane.f32.xlu0 %v1066
        %v1068 = vpop.xlane.xlu0 %1067
        %v1069 = vsel %vm1047, %v1042, -inf
        %1070 = vmax.xlane.f32.xlu0 %v1069
        %v1071 = vpop.xlane.xlu0 %1070
        %v1072 = vsel %vm1047, %v1043, -inf
        %1073 = vmax.xlane.f32.xlu0 %v1072
        %v1074 = vpop.xlane.xlu0 %1073
        %v1075 = vsel %vm1047, %v1044, -inf
        %1076 = vmax.xlane.f32.xlu0 %v1075
        %v1077 = vpop.xlane.xlu0 %1076
        %v1078 = vsel %vm1047, %v1045, -inf
        %1079 = vmax.xlane.f32.xlu0 %v1078
        %v1080 = vpop.xlane.xlu0 %1079
        %v1081 = vsel %vm1047, %v1046, -inf
        %1082 = vmax.xlane.f32.xlu0 %v1081
        %v1083 = vpop.xlane.xlu0 %1082
        %v1084 = vsub.f32 %v1035, %v1050
        %v1085 = vsub.f32 %v1036, %v1053
        %v1086 = vsub.f32 %v1037, %v1056
        %v1087 = vsub.f32 %v1038, %v1059
        %v1088 = vsub.f32 %v1039, %v1062
        %v1089 = vsub.f32 %v1040, %v1065
        %v1090 = vsub.f32 %v1041, %v1068
        %v1091 = vsub.f32 %v1042, %v1071
        %v1092 = vsub.f32 %v1043, %v1074
        %v1093 = vsub.f32 %v1044, %v1077
        %v1094 = vsub.f32 %v1045, %v1080
        %v1095 = vsub.f32 %v1046, %v1083
        %v1096 = vmul.f32 %v1084, 1.442695
        %v1097 = vpow.pop %v1096
        %v1098 = vmul.f32 %v1085, 1.442695
        %v1099 = vpow.pop %v1098
        %v1100 = vmul.f32 %v1086, 1.442695
        %v1101 = vpow.pop %v1100
        %v1102 = vmul.f32 %v1087, 1.442695
        %v1103 = vpow.pop %v1102
        %v1104 = vmul.f32 %v1088, 1.442695
        %v1105 = vpow.pop %v1104
        %v1106 = vmul.f32 %v1089, 1.442695
        %v1107 = vpow.pop %v1106
        %v1108 = vmul.f32 %v1090, 1.442695
        %v1109 = vpow.pop %v1108
        %v1110 = vmul.f32 %v1091, 1.442695
        %v1111 = vpow.pop %v1110
        %v1112 = vmul.f32 %v1092, 1.442695
        %v1113 = vpow.pop %v1112
        %v1114 = vmul.f32 %v1093, 1.442695
        %v1115 = vpow.pop %v1114
        %v1116 = vmul.f32 %v1094, 1.442695
        %v1117 = vpow.pop %v1116
        %v1118 = vmul.f32 %v1095, 1.442695
        %v1119 = vpow.pop %v1118
        %v1120 = vsel %vm1047, %v1097, 0.0
        %1121 = vadd.xlane.f32.xlu0 %v1120
        %v1122 = vpop.xlane.xlu0 %1121
        %v1123 = vsel %vm1047, %v1099, 0.0
        %1124 = vadd.xlane.f32.xlu0 %v1123
        %v1125 = vpop.xlane.xlu0 %1124
        %v1126 = vsel %vm1047, %v1101, 0.0
        %1127 = vadd.xlane.f32.xlu0 %v1126
        %v1128 = vpop.xlane.xlu0 %1127
        %v1129 = vsel %vm1047, %v1103, 0.0
        %1130 = vadd.xlane.f32.xlu0 %v1129
        %v1131 = vpop.xlane.xlu0 %1130
        %v1132 = vsel %vm1047, %v1105, 0.0
        %1133 = vadd.xlane.f32.xlu0 %v1132
        %v1134 = vpop.xlane.xlu0 %1133
        %v1135 = vsel %vm1047, %v1107, 0.0
        %1136 = vadd.xlane.f32.xlu0 %v1135
        %v1137 = vpop.xlane.xlu0 %1136
        %v1138 = vsel %vm1047, %v1109, 0.0
        %1139 = vadd.xlane.f32.xlu0 %v1138
        %v1140 = vpop.xlane.xlu0 %1139
        %v1141 = vsel %vm1047, %v1111, 0.0
        %1142 = vadd.xlane.f32.xlu0 %v1141
        %v1143 = vpop.xlane.xlu0 %1142
        %v1144 = vsel %vm1047, %v1113, 0.0
        %1145 = vadd.xlane.f32.xlu0 %v1144
        %v1146 = vpop.xlane.xlu0 %1145
        %v1147 = vsel %vm1047, %v1115, 0.0
        %1148 = vadd.xlane.f32.xlu0 %v1147
        %v1149 = vpop.xlane.xlu0 %1148
        %v1150 = vsel %vm1047, %v1117, 0.0
        %1151 = vadd.xlane.f32.xlu0 %v1150
        %v1152 = vpop.xlane.xlu0 %1151
        %v1153 = vsel %vm1047, %v1119, 0.0
        %1154 = vadd.xlane.f32.xlu0 %v1153
        %v1155 = vpop.xlane.xlu0 %1154
        %v1156 = vrcp.pop %v1122
        %v1157 = vrcp.pop %v1125
        %v1158 = vrcp.pop %v1128
        %v1159 = vrcp.pop %v1131
        %v1160 = vrcp.pop %v1134
        %v1161 = vrcp.pop %v1137
        %v1162 = vrcp.pop %v1140
        %v1163 = vrcp.pop %v1143
        %v1164 = vrcp.pop %v1146
        %v1165 = vrcp.pop %v1149
        %v1166 = vrcp.pop %v1152
        %v1167 = vrcp.pop %v1155
        %v1168 = vmul.f32 %v1122, %v1156
        %v1169 = vmul.f32 %v1125, %v1157
        %v1170 = vmul.f32 %v1128, %v1158
        %v1171 = vmul.f32 %v1131, %v1159
        %v1172 = vmul.f32 %v1134, %v1160
        %v1173 = vmul.f32 %v1137, %v1161
        %v1174 = vmul.f32 %v1140, %v1162
        %v1175 = vmul.f32 %v1143, %v1163
        %v1176 = vmul.f32 %v1146, %v1164
        %v1177 = vmul.f32 %v1149, %v1165
        %v1178 = vmul.f32 %v1152, %v1166
        %v1179 = vmul.f32 %v1155, %v1167
        %v1180 = vsub.f32 2.0, %v1168
        %v1181 = vsub.f32 2.0, %v1169
        %v1182 = vsub.f32 2.0, %v1170
        %v1183 = vsub.f32 2.0, %v1171
        %v1184 = vsub.f32 2.0, %v1172
        %v1185 = vsub.f32 2.0, %v1173
        %v1186 = vsub.f32 2.0, %v1174
        %v1187 = vsub.f32 2.0, %v1175
        %v1188 = vsub.f32 2.0, %v1176
        %v1189 = vsub.f32 2.0, %v1177
        %v1190 = vsub.f32 2.0, %v1178
        %v1191 = vsub.f32 2.0, %v1179
        %v1192 = vmul.f32 %v1156, %v1180
        %v1193 = vmul.f32 %v1157, %v1181
        %v1194 = vmul.f32 %v1158, %v1182
        %v1195 = vmul.f32 %v1159, %v1183
        %v1196 = vmul.f32 %v1160, %v1184
        %v1197 = vmul.f32 %v1161, %v1185
        %v1198 = vmul.f32 %v1162, %v1186
        %v1199 = vmul.f32 %v1163, %v1187
        %v1200 = vmul.f32 %v1164, %v1188
        %v1201 = vmul.f32 %v1165, %v1189
        %v1202 = vmul.f32 %v1166, %v1190
        %v1203 = vmul.f32 %v1167, %v1191
        %v1204 = vmul.f32 %v1097, %v1192
        %v1205 = vmul.f32 %v1099, %v1193
        %v1206 = vmul.f32 %v1101, %v1194
        %v1207 = vmul.f32 %v1103, %v1195
        %v1208 = vmul.f32 %v1105, %v1196
        %v1209 = vmul.f32 %v1107, %v1197
        %v1210 = vmul.f32 %v1109, %v1198
        %v1211 = vmul.f32 %v1111, %v1199
        %v1212 = vmul.f32 %v1113, %v1200
        %v1213 = vmul.f32 %v1115, %v1201
        %v1214 = vmul.f32 %v1117, %v1202
        %v1215 = vmul.f32 %v1119, %v1203
        %1216 = vst.msk [vmem:[%s561] sm:$0xff] %vm1047, %v1204
        %1217 = vst.msk [vmem:[%s561 + $0x8] sm:$0xff] %vm1047, %v1205
        %1218 = vst.msk [vmem:[%s561 + $0x10] sm:$0xff] %vm1047, %v1206
        %1219 = vst.msk [vmem:[%s561 + $0x18] sm:$0xff] %vm1047, %v1207
        %1220 = vst.msk [vmem:[%s561 + $0x20] sm:$0xff] %vm1047, %v1208
        %1221 = vst.msk [vmem:[%s561 + $0x28] sm:$0xff] %vm1047, %v1209
        %1222 = vst.msk [vmem:[%s561 + $0x30] sm:$0xff] %vm1047, %v1210
        %1223 = vst.msk [vmem:[%s561 + $0x38] sm:$0xff] %vm1047, %v1211
        %1224 = vst.msk [vmem:[%s561 + $0x40] sm:$0xff] %vm1047, %v1212
        %1225 = vst.msk [vmem:[%s561 + $0x48] sm:$0xff] %vm1047, %v1213
        %1226 = vst.msk [vmem:[%s561 + $0x50] sm:$0xff] %vm1047, %v1214
        %1227 = vst.msk [vmem:[%s561 + $0x58] sm:$0xff] %vm1047, %v1215
        %v1228 = vpack.c.bf16 %v1205, %v1204
        %v1229 = vpack.c.bf16 %v1206, %v1206
        %v1230 = vpack.c.bf16 %v1208, %v1207
        %v1231 = vpack.c.bf16 %v1209, %v1209
        %v1232 = vpack.c.bf16 %v1211, %v1210
        %v1233 = vpack.c.bf16 %v1212, %v1212
        %v1234 = vpack.c.bf16 %v1214, %v1213
        %v1235 = vpack.c.bf16 %v1215, %v1215
        %1236 = vrot.lane.b32.xlu0 %v757, 64
        %v1237 = vpop.permute.xlu0 %1236
        %1238 = vrot.lane.b32.xlu0 %v758, 64
        %v1239 = vpop.permute.xlu0 %1238
        %v1242 = vsel %vm1047, %v1228, 0
        %v1245 = vsel %vm1047, %v1229, 0
        %vm1247 = vcmask 1043456
        %v1249 = vsel %vm1247, %v1239, 0
        %1251 = vmatprep.subr.bf16.mxu0 0
        %1252 = vmatpush1.bf16.msra.mxu0 0
        %1253 = vmatprep.subr.bf16.mxu0 0
        %1254 = vmatpush1.bf16.msra.mxu0 0
        %1255 = vmatprep.subr.bf16.mxu0 0
        %1256 = vmatpush1.bf16.msra.mxu0 0
        %1257 = vmatprep.subr.bf16.mxu0 0
        %1258 = vmatpush1.bf16.msra.mxu0 0
        %1259 = vmatprep.subr.bf16.mxu0 0
        %1260 = vmatpush1.bf16.msra.mxu0 0
        %1261 = vmatprep.subr.bf16.mxu0 0
        %1262 = vmatpush1.bf16.msra.mxu0 0
        %1263 = vmatprep.subr.bf16.mxu0 0
        %1264 = vmatpush1.bf16.msra.mxu0 %v1249
        %1265 = vmatprep.subr.bf16.mxu0 0
        %1266 = vmatpush1.bf16.msra.mxu0 %v1237
        %1267 = vmatprep.subr.bf16.mxu0 0
        %1268 = vmatpush2.bf16.msra.mxu0 0
        %1269 = vmatprep.subr.bf16.mxu0 0
        %1270 = vmatpush2.bf16.msra.mxu0 0
        %1271 = vmatprep.subr.bf16.mxu0 0
        %1272 = vmatpush2.bf16.msra.mxu0 0
        %1273 = vmatprep.subr.bf16.mxu0 0
        %1274 = vmatpush2.bf16.msra.mxu0 0
        %1275 = vmatprep.subr.bf16.mxu0 0
        %1276 = vmatpush2.bf16.msra.mxu0 0
        %1277 = vmatprep.subr.bf16.mxu0 0
        %1278 = vmatpush2.bf16.msra.mxu0 0
        %1279 = vmatprep.subr.bf16.mxu0 0
        %1280 = vmatpush2.bf16.msra.mxu0 0
        %1281 = vmatprep.subr.bf16.mxu0 0
        %1282 = vmatpush2.bf16.msra.mxu0 0
        %1283 = vmatprep.mubr.bf16.mxu0 0
        %1284 = vmatmul.mubr.bf16.gmra.mxu0 %v1242
        %v1285 = vpop.f32.mrf.mxu0
        %v1286 = vadd.f32 0.0, %v1285
        %v1287 = vpop.f32.mrf.mxu0
        %v1288 = vpop.f32.mrf.mxu0
        %v1289 = vadd.f32 0.0, %v1288
        %v1290 = vpop.f32.mrf.mxu0
        %1291 = vmatprep.mubr.bf16.mxu0 0
        %1292 = vmatmul.mubr.bf16.gmra.mxu0 %v1245
        %v1293 = vpop.f32.mrf.mxu0
        %v1294 = vadd.f32 0.0, %v1293
        %v1295 = vpop.f32.mrf.mxu0
        %v1296 = vpop.f32.mrf.mxu0
        %v1297 = vpop.f32.mrf.mxu0
        %1298 = vdwg.mxu0
        %1299 = vrot.lane.b32.xlu0 %v762, 64
        %v1300 = vpop.permute.xlu0 %1299
        %1301 = vrot.lane.b32.xlu0 %v764, 64
        %v1302 = vpop.permute.xlu0 %1301
        %v1305 = vsel %vm1047, %v1230, 0
        %v1308 = vsel %vm1047, %v1231, 0
        %v1311 = vsel %vm1247, %v1302, 0
        %1313 = vmatprep.subr.bf16.mxu0 0
        %1314 = vmatpush1.bf16.msra.mxu0 0
        %1315 = vmatprep.subr.bf16.mxu0 0
        %1316 = vmatpush1.bf16.msra.mxu0 0
        %1317 = vmatprep.subr.bf16.mxu0 0
        %1318 = vmatpush1.bf16.msra.mxu0 0
        %1319 = vmatprep.subr.bf16.mxu0 0
        %1320 = vmatpush1.bf16.msra.mxu0 0
        %1321 = vmatprep.subr.bf16.mxu0 0
        %1322 = vmatpush1.bf16.msra.mxu0 0
        %1323 = vmatprep.subr.bf16.mxu0 0
        %1324 = vmatpush1.bf16.msra.mxu0 0
        %1325 = vmatprep.subr.bf16.mxu0 0
        %1326 = vmatpush1.bf16.msra.mxu0 %v1311
        %1327 = vmatprep.subr.bf16.mxu0 0
        %1328 = vmatpush1.bf16.msra.mxu0 %v1300
        %1329 = vmatprep.subr.bf16.mxu0 0
        %1330 = vmatpush2.bf16.msra.mxu0 0
        %1331 = vmatprep.subr.bf16.mxu0 0
        %1332 = vmatpush2.bf16.msra.mxu0 0
        %1333 = vmatprep.subr.bf16.mxu0 0
        %1334 = vmatpush2.bf16.msra.mxu0 0
        %1335 = vmatprep.subr.bf16.mxu0 0
        %1336 = vmatpush2.bf16.msra.mxu0 0
        %1337 = vmatprep.subr.bf16.mxu0 0
        %1338 = vmatpush2.bf16.msra.mxu0 0
        %1339 = vmatprep.subr.bf16.mxu0 0
        %1340 = vmatpush2.bf16.msra.mxu0 0
        %1341 = vmatprep.subr.bf16.mxu0 0
        %1342 = vmatpush2.bf16.msra.mxu0 0
        %1343 = vmatprep.subr.bf16.mxu0 0
        %1344 = vmatpush2.bf16.msra.mxu0 0
        %1345 = vmatprep.mubr.bf16.mxu0 0
        %1346 = vmatmul.mubr.bf16.gmra.mxu0 %v1305
        %v1347 = vpop.f32.mrf.mxu0
        %v1348 = vadd.f32 0.0, %v1347
        %v1349 = vpop.f32.mrf.mxu0
        %v1350 = vpop.f32.mrf.mxu0
        %v1351 = vadd.f32 0.0, %v1350
        %v1352 = vpop.f32.mrf.mxu0
        %1353 = vmatprep.mubr.bf16.mxu0 0
        %1354 = vmatmul.mubr.bf16.gmra.mxu0 %v1308
        %v1355 = vpop.f32.mrf.mxu0
        %v1356 = vadd.f32 0.0, %v1355
        %v1357 = vpop.f32.mrf.mxu0
        %v1358 = vpop.f32.mrf.mxu0
        %v1359 = vpop.f32.mrf.mxu0
        %1360 = vdwg.mxu0
        %1361 = vrot.lane.b32.xlu0 %v766, 64
        %v1362 = vpop.permute.xlu0 %1361
        %1363 = vrot.lane.b32.xlu0 %v768, 64
        %v1364 = vpop.permute.xlu0 %1363
        %v1367 = vsel %vm1047, %v1232, 0
        %v1370 = vsel %vm1047, %v1233, 0
        %v1373 = vsel %vm1247, %v1364, 0
        %1375 = vmatprep.subr.bf16.mxu0 0
        %1376 = vmatpush1.bf16.msra.mxu0 0
        %1377 = vmatprep.subr.bf16.mxu0 0
        %1378 = vmatpush1.bf16.msra.mxu0 0
        %1379 = vmatprep.subr.bf16.mxu0 0
        %1380 = vmatpush1.bf16.msra.mxu0 0
        %1381 = vmatprep.subr.bf16.mxu0 0
        %1382 = vmatpush1.bf16.msra.mxu0 0
        %1383 = vmatprep.subr.bf16.mxu0 0
        %1384 = vmatpush1.bf16.msra.mxu0 0
        %1385 = vmatprep.subr.bf16.mxu0 0
        %1386 = vmatpush1.bf16.msra.mxu0 0
        %1387 = vmatprep.subr.bf16.mxu0 0
        %1388 = vmatpush1.bf16.msra.mxu0 %v1373
        %1389 = vmatprep.subr.bf16.mxu0 0
        %1390 = vmatpush1.bf16.msra.mxu0 %v1362
        %1391 = vmatprep.subr.bf16.mxu0 0
        %1392 = vmatpush2.bf16.msra.mxu0 0
        %1393 = vmatprep.subr.bf16.mxu0 0
        %1394 = vmatpush2.bf16.msra.mxu0 0
        %1395 = vmatprep.subr.bf16.mxu0 0
        %1396 = vmatpush2.bf16.msra.mxu0 0
        %1397 = vmatprep.subr.bf16.mxu0 0
        %1398 = vmatpush2.bf16.msra.mxu0 0
        %1399 = vmatprep.subr.bf16.mxu0 0
        %1400 = vmatpush2.bf16.msra.mxu0 0
        %1401 = vmatprep.subr.bf16.mxu0 0
        %1402 = vmatpush2.bf16.msra.mxu0 0
        %1403 = vmatprep.subr.bf16.mxu0 0
        %1404 = vmatpush2.bf16.msra.mxu0 0
        %1405 = vmatprep.subr.bf16.mxu0 0
        %1406 = vmatpush2.bf16.msra.mxu0 0
        %1407 = vmatprep.mubr.bf16.mxu0 0
        %1408 = vmatmul.mubr.bf16.gmra.mxu0 %v1367
        %v1409 = vpop.f32.mrf.mxu0
        %v1410 = vadd.f32 0.0, %v1409
        %v1411 = vpop.f32.mrf.mxu0
        %v1412 = vpop.f32.mrf.mxu0
        %v1413 = vadd.f32 0.0, %v1412
        %v1414 = vpop.f32.mrf.mxu0
        %1415 = vmatprep.mubr.bf16.mxu0 0
        %1416 = vmatmul.mubr.bf16.gmra.mxu0 %v1370
        %v1417 = vpop.f32.mrf.mxu0
        %v1418 = vadd.f32 0.0, %v1417
        %v1419 = vpop.f32.mrf.mxu0
        %v1420 = vpop.f32.mrf.mxu0
        %v1421 = vpop.f32.mrf.mxu0
        %1422 = vdwg.mxu0
        %1423 = vrot.lane.b32.xlu0 %v770, 64
        %v1424 = vpop.permute.xlu0 %1423
        %1425 = vrot.lane.b32.xlu0 %v772, 64
        %v1426 = vpop.permute.xlu0 %1425
        %v1429 = vsel %vm1047, %v1234, 0
        %v1432 = vsel %vm1047, %v1235, 0
        %v1435 = vsel %vm1247, %v1426, 0
        %1437 = vmatprep.subr.bf16.mxu0 0
        %1438 = vmatpush1.bf16.msra.mxu0 0
        %1439 = vmatprep.subr.bf16.mxu0 0
        %1440 = vmatpush1.bf16.msra.mxu0 0
        %1441 = vmatprep.subr.bf16.mxu0 0
        %1442 = vmatpush1.bf16.msra.mxu0 0
        %1443 = vmatprep.subr.bf16.mxu0 0
        %1444 = vmatpush1.bf16.msra.mxu0 0
        %1445 = vmatprep.subr.bf16.mxu0 0
        %1446 = vmatpush1.bf16.msra.mxu0 0
        %1447 = vmatprep.subr.bf16.mxu0 0
        %1448 = vmatpush1.bf16.msra.mxu0 0
        %1449 = vmatprep.subr.bf16.mxu0 0
        %1450 = vmatpush1.bf16.msra.mxu0 %v1435
        %1451 = vmatprep.subr.bf16.mxu0 0
        %1452 = vmatpush1.bf16.msra.mxu0 %v1424
        %1453 = vmatprep.subr.bf16.mxu0 0
        %1454 = vmatpush2.bf16.msra.mxu0 0
        %1455 = vmatprep.subr.bf16.mxu0 0
        %1456 = vmatpush2.bf16.msra.mxu0 0
        %1457 = vmatprep.subr.bf16.mxu0 0
        %1458 = vmatpush2.bf16.msra.mxu0 0
        %1459 = vmatprep.subr.bf16.mxu0 0
        %1460 = vmatpush2.bf16.msra.mxu0 0
        %1461 = vmatprep.subr.bf16.mxu0 0
        %1462 = vmatpush2.bf16.msra.mxu0 0
        %1463 = vmatprep.subr.bf16.mxu0 0
        %1464 = vmatpush2.bf16.msra.mxu0 0
        %1465 = vmatprep.subr.bf16.mxu0 0
        %1466 = vmatpush2.bf16.msra.mxu0 0
        %1467 = vmatprep.subr.bf16.mxu0 0
        %1468 = vmatpush2.bf16.msra.mxu0 0
        %1469 = vmatprep.mubr.bf16.mxu0 0
        %1470 = vmatmul.mubr.bf16.gmra.mxu0 %v1429
        %v1471 = vpop.f32.mrf.mxu0
        %v1472 = vadd.f32 0.0, %v1471
        %v1473 = vpop.f32.mrf.mxu0
        %v1474 = vpop.f32.mrf.mxu0
        %v1475 = vadd.f32 0.0, %v1474
        %v1476 = vpop.f32.mrf.mxu0
        %1477 = vmatprep.mubr.bf16.mxu0 0
        %1478 = vmatmul.mubr.bf16.gmra.mxu0 %v1432
        %v1479 = vpop.f32.mrf.mxu0
        %v1480 = vadd.f32 0.0, %v1479
        %v1481 = vpop.f32.mrf.mxu0
        %v1482 = vpop.f32.mrf.mxu0
        %v1483 = vpop.f32.mrf.mxu0
        %1484 = vdwg.mxu0
        %v1485 = vpack.c.bf16 %v1289, %v1286
        %v1486 = vpack.c.bf16 %v1294, %v1294
        %v1487 = vpack.c.bf16 %v1351, %v1348
        %v1488 = vpack.c.bf16 %v1356, %v1356
        %v1489 = vpack.c.bf16 %v1413, %v1410
        %v1490 = vpack.c.bf16 %v1418, %v1418
        %v1491 = vpack.c.bf16 %v1475, %v1472
        %v1492 = vpack.c.bf16 %v1480, %v1480
        %1495 = vrot.lane.b32.xlu0 %v1487, 8
        %v1496 = vpop.permute.xlu0 %1495
        %1497 = vrot.lane.b32.xlu0 %v1488, 8
        %v1498 = vpop.permute.xlu0 %1497
        %1501 = vrot.lane.b32.xlu0 %v1489, 16
        %v1502 = vpop.permute.xlu0 %1501
        %1503 = vrot.lane.b32.xlu0 %v1490, 16
        %v1504 = vpop.permute.xlu0 %1503
        %1507 = vrot.lane.b32.xlu0 %v1491, 24
        %v1508 = vpop.permute.xlu0 %1507
        %1509 = vrot.lane.b32.xlu0 %v1492, 24
        %v1510 = vpop.permute.xlu0 %1509
        %v1513 = vsel %vm777, %v1485, %v1496
        %v1516 = vsel %vm777, %v1486, %v1498
        %vm1517 = vcmask 130048
        %v1519 = vsel %vm1517, %v1513, %v1502
        %v1521 = vsel %vm1517, %v1516, %v1504
        %v1523 = vsel %vm1047, %v1519, %v1508
        %v1525 = vsel %vm1047, %v1521, %v1510
        %v1526 = vld [vmem:[%s583] sm:$0xf]
        %v1527 = vld [vmem:[%s583 + $0x4] sm:$0xf]
        %v1528 = vld [vmem:[%s583 + $0x8] sm:$0xf]
        %v1529 = vld [vmem:[%s583 + $0xc] sm:$0xf]
        %v1530 = vld [vmem:[%s586] sm:$0x1]
        %v1532 = vlaneseq
        %v1533 = vshrl.u32 %v1532, 7
        %v1534 = vsub.s32 0, %v1533
        %v1535 = vrot.slane %v1530, %v1534
        %v1541 = vunpack.c.l.b16 %v1526
        %v1542 = vunpack.c.l.b16 %v1527
        %v1543 = vunpack.c.l.b16 %v1528
        %v1544 = vunpack.c.l.b16 %v1529
        %v1545 = vpack.c.b16 %v1542, %v1541
        %v1546 = vpack.c.b16 %v1544, %v1543
        %v1549 = vsel %vm623, %v1523, 0
        %v1551 = vsel %vm623, %v1525, 0
        %1553 = vmatprep.subr.bf16.mxu0 0
        %1554 = vmatpush1.bf16.msra.mxu0 0
        %1555 = vmatprep.subr.bf16.mxu0 0
        %1556 = vmatpush1.bf16.msra.mxu0 0
        %1557 = vmatprep.subr.bf16.mxu0 0
        %1558 = vmatpush1.bf16.msra.mxu0 0
        %1559 = vmatprep.subr.bf16.mxu0 0
        %1560 = vmatpush1.bf16.msra.mxu0 0
        %1561 = vmatprep.subr.bf16.mxu0 0
        %1562 = vmatpush1.bf16.msra.mxu0 0
        %1563 = vmatprep.subr.bf16.mxu0 0
        %1564 = vmatpush1.bf16.msra.mxu0 0
        %1565 = vmatprep.subr.bf16.mxu0 0
        %1566 = vmatpush1.bf16.msra.mxu0 %v1546
        %1567 = vmatprep.subr.bf16.mxu0 0
        %1568 = vmatpush1.bf16.msra.mxu0 %v1545
        %1569 = vmatprep.subr.bf16.mxu0 0
        %1570 = vmatpush2.bf16.msra.mxu0 0
        %1571 = vmatprep.subr.bf16.mxu0 0
        %1572 = vmatpush2.bf16.msra.mxu0 0
        %1573 = vmatprep.subr.bf16.mxu0 0
        %1574 = vmatpush2.bf16.msra.mxu0 0
        %1575 = vmatprep.subr.bf16.mxu0 0
        %1576 = vmatpush2.bf16.msra.mxu0 0
        %1577 = vmatprep.subr.bf16.mxu0 0
        %1578 = vmatpush2.bf16.msra.mxu0 0
        %1579 = vmatprep.subr.bf16.mxu0 0
        %1580 = vmatpush2.bf16.msra.mxu0 0
        %1581 = vmatprep.subr.bf16.mxu0 0
        %1582 = vmatpush2.bf16.msra.mxu0 0
        %1583 = vmatprep.subr.bf16.mxu0 0
        %1584 = vmatpush2.bf16.msra.mxu0 0
        %1585 = vmatprep.mubr.bf16.mxu0 0
        %1586 = vmatmul.mubr.bf16.gmra.mxu0 %v1549
        %v1587 = vpop.f32.mrf.mxu0
        %v1588 = vadd.f32 %v1535, %v1587
        %v1589 = vpop.f32.mrf.mxu0
        %v1590 = vpop.f32.mrf.mxu0
        %v1591 = vadd.f32 %v1535, %v1590
        %v1592 = vpop.f32.mrf.mxu0
        %1593 = vmatprep.mubr.bf16.mxu0 0
        %1594 = vmatmul.mubr.bf16.gmra.mxu0 %v1551
        %v1595 = vpop.f32.mrf.mxu0
        %v1596 = vadd.f32 %v1535, %v1595
        %v1597 = vpop.f32.mrf.mxu0
        %v1598 = vpop.f32.mrf.mxu0
        %v1599 = vpop.f32.mrf.mxu0
        %1600 = vdwg.mxu0
        %v1601 = vadd.f32 %v619, %v1588
        %v1602 = vadd.f32 %v620, %v1591
        %v1603 = vadd.f32 %v621, %v1596
        %v1604 = vld [vmem:[%s590] sm:$0x3]
        %v1605 = vsel %vm623, %v1601, 0.0
        %1606 = vadd.xlane.f32.xlu0 %v1605
        %v1607 = vpop.xlane.xlu0 %1606
        %v1608 = vsel %vm623, %v1602, 0.0
        %1609 = vadd.xlane.f32.xlu0 %v1608
        %v1610 = vpop.xlane.xlu0 %1609
        %v1611 = vsel %vm623, %v1603, 0.0
        %1612 = vadd.xlane.f32.xlu0 %v1611
        %v1613 = vpop.xlane.xlu0 %1612
        %v1614 = vmul.f32 %v1607, %v633
        %v1615 = vmul.f32 %v1610, %v633
        %v1616 = vmul.f32 %v1613, %v633
        %v1617 = vsub.f32 %v1601, %v1614
        %v1618 = vsub.f32 %v1602, %v1615
        %v1619 = vsub.f32 %v1603, %v1616
        %v1620 = vmul.f32 %v1617, %v1617
        %v1621 = vmul.f32 %v1618, %v1618
        %v1622 = vmul.f32 %v1619, %v1619
        %v1623 = vsel %vm623, %v1620, 0.0
        %1624 = vadd.xlane.f32.xlu0 %v1623
        %v1625 = vpop.xlane.xlu0 %1624
        %v1626 = vsel %vm623, %v1621, 0.0
        %1627 = vadd.xlane.f32.xlu0 %v1626
        %v1628 = vpop.xlane.xlu0 %1627
        %v1629 = vsel %vm623, %v1622, 0.0
        %1630 = vadd.xlane.f32.xlu0 %v1629
        %v1631 = vpop.xlane.xlu0 %1630
        %v1632 = vmul.f32 %v1625, %v633
        %v1633 = vmul.f32 %v1628, %v633
        %v1634 = vmul.f32 %v1631, %v633
        %v1635 = vadd.f32 %v1632, 1e-06
        %v1636 = vadd.f32 %v1633, 1e-06
        %v1637 = vadd.f32 %v1634, 1e-06
        %v1638 = vrsqrt.pop %v1635
        %v1639 = vrsqrt.pop %v1636
        %v1640 = vrsqrt.pop %v1637
        %v1641 = vmul.f32 %v1617, %v1638
        %v1642 = vmul.f32 %v1618, %v1639
        %v1643 = vmul.f32 %v1619, %v1640
        %v1644 = vlaneseq
        %v1645 = vshrl.u32 %v1644, 7
        %v1646 = vsub.s32 0, %v1645
        %v1647 = vrot.slane %v1604, %v1646
        %v1648 = vmul.f32 %v1641, %v1647
        %v1649 = vmul.f32 %v1642, %v1647
        %v1650 = vmul.f32 %v1643, %v1647
        %v1651 = vlaneseq
        %v1652 = vshrl.u32 %v1651, 7
        %v1653 = vsub.s32 1, %v1652
        %v1654 = vrot.slane %v1604, %v1653
        %v1655 = vadd.f32 %v1648, %v1654
        %v1656 = vadd.f32 %v1649, %v1654
        %v1657 = vadd.f32 %v1650, %v1654
        %v1658 = vpack.c.bf16 %v1656, %v1655
        %v1659 = vpack.c.bf16 %v1657, %v1657
        %v1660 = vld [vmem:[%s595] sm:$0xf]
        %v1661 = vld [vmem:[%s595 + $0x4] sm:$0xf]
        %v1662 = vld [vmem:[%s595 + $0x8] sm:$0xf]
        %v1663 = vld [vmem:[%s595 + $0xc] sm:$0xf]
        %v1664 = vld [vmem:[%s598] sm:$0x1]
        %v1666 = vlaneseq
        %v1667 = vshrl.u32 %v1666, 7
        %v1668 = vsub.s32 0, %v1667
        %v1669 = vrot.slane %v1664, %v1668
        %v1675 = vunpack.c.l.b16 %v1660
        %v1676 = vunpack.c.l.b16 %v1661
        %v1677 = vunpack.c.l.b16 %v1662
        %v1678 = vunpack.c.l.b16 %v1663
        %v1679 = vpack.c.b16 %v1676, %v1675
        %v1680 = vpack.c.b16 %v1678, %v1677
        %v1684 = vsel %vm623, %v1658, 0
        %v1687 = vsel %vm623, %v1659, 0
        %1689 = vmatprep.subr.bf16.mxu0 0
        %1690 = vmatpush1.bf16.msra.mxu0 0
        %1691 = vmatprep.subr.bf16.mxu0 0
        %1692 = vmatpush1.bf16.msra.mxu0 0
        %1693 = vmatprep.subr.bf16.mxu0 0
        %1694 = vmatpush1.bf16.msra.mxu0 0
        %1695 = vmatprep.subr.bf16.mxu0 0
        %1696 = vmatpush1.bf16.msra.mxu0 0
        %1697 = vmatprep.subr.bf16.mxu0 0
        %1698 = vmatpush1.bf16.msra.mxu0 0
        %1699 = vmatprep.subr.bf16.mxu0 0
        %1700 = vmatpush1.bf16.msra.mxu0 0
        %1701 = vmatprep.subr.bf16.mxu0 0
        %1702 = vmatpush1.bf16.msra.mxu0 %v1680
        %1703 = vmatprep.subr.bf16.mxu0 0
        %1704 = vmatpush1.bf16.msra.mxu0 %v1679
        %1705 = vmatprep.subr.bf16.mxu0 0
        %1706 = vmatpush2.bf16.msra.mxu0 0
        %1707 = vmatprep.subr.bf16.mxu0 0
        %1708 = vmatpush2.bf16.msra.mxu0 0
        %1709 = vmatprep.subr.bf16.mxu0 0
        %1710 = vmatpush2.bf16.msra.mxu0 0
        %1711 = vmatprep.subr.bf16.mxu0 0
        %1712 = vmatpush2.bf16.msra.mxu0 0
        %1713 = vmatprep.subr.bf16.mxu0 0
        %1714 = vmatpush2.bf16.msra.mxu0 0
        %1715 = vmatprep.subr.bf16.mxu0 0
        %1716 = vmatpush2.bf16.msra.mxu0 0
        %1717 = vmatprep.subr.bf16.mxu0 0
        %1718 = vmatpush2.bf16.msra.mxu0 0
        %1719 = vmatprep.subr.bf16.mxu0 0
        %1720 = vmatpush2.bf16.msra.mxu0 0
        %1721 = vmatprep.mubr.bf16.mxu0 0
        %1722 = vmatmul.mubr.bf16.gmra.mxu0 %v1684
        %v1723 = vpop.f32.mrf.mxu0
        %v1724 = vadd.f32 %v1669, %v1723
        %v1725 = vpop.f32.mrf.mxu0
        %v1726 = vpop.f32.mrf.mxu0
        %v1727 = vadd.f32 %v1669, %v1726
        %v1728 = vpop.f32.mrf.mxu0
        %1729 = vmatprep.mubr.bf16.mxu0 0
        %1730 = vmatmul.mubr.bf16.gmra.mxu0 %v1687
        %v1731 = vpop.f32.mrf.mxu0
        %v1732 = vadd.f32 %v1669, %v1731
        %v1733 = vpop.f32.mrf.mxu0
        %v1734 = vpop.f32.mrf.mxu0
        %v1735 = vpop.f32.mrf.mxu0
        %1736 = vdwg.mxu0
        %v1737 = vmul.f32 %v1724, 0.5
        %v1738 = vmul.f32 %v1727, 0.5
        %v1739 = vmul.f32 %v1732, 0.5
        %v1740 = vmul.f32 %v1724, 0.044715
        %v1741 = vmul.f32 %v1727, 0.044715
        %v1742 = vmul.f32 %v1732, 0.044715
        %v1743 = vmul.f32 %v1740, %v1724
        %v1744 = vmul.f32 %v1741, %v1727
        %v1745 = vmul.f32 %v1742, %v1732
        %v1746 = vmul.f32 %v1743, %v1724
        %v1747 = vmul.f32 %v1744, %v1727
        %v1748 = vmul.f32 %v1745, %v1732
        %v1749 = vadd.f32 %v1724, %v1746
        %v1750 = vadd.f32 %v1727, %v1747
        %v1751 = vadd.f32 %v1732, %v1748
        %v1752 = vmul.f32 %v1749, 0.7978846
        %v1753 = vmul.f32 %v1750, 0.7978846
        %v1754 = vmul.f32 %v1751, 0.7978846
        %v1755 = vtanh.pop %v1752
        %v1756 = vtanh.pop %v1753
        %v1757 = vtanh.pop %v1754
        %v1758 = vadd.f32 %v1755, 1.0
        %v1759 = vadd.f32 %v1756, 1.0
        %v1760 = vadd.f32 %v1757, 1.0
        %v1761 = vmul.f32 %v1737, %v1758
        %v1762 = vmul.f32 %v1738, %v1759
        %v1763 = vmul.f32 %v1739, %v1760
        %v1764 = vpack.c.bf16 %v1762, %v1761
        %v1765 = vpack.c.bf16 %v1763, %v1763
        %v1766 = vld [vmem:[%s603] sm:$0xf]
        %v1767 = vld [vmem:[%s603 + $0x4] sm:$0xf]
        %v1768 = vld [vmem:[%s603 + $0x8] sm:$0xf]
        %v1769 = vld [vmem:[%s603 + $0xc] sm:$0xf]
        %v1770 = vld [vmem:[%s603 + $0x10] sm:$0xf]
        %v1771 = vld [vmem:[%s603 + $0x14] sm:$0xf]
        %v1772 = vld [vmem:[%s603 + $0x18] sm:$0xf]
        %v1773 = vld [vmem:[%s603 + $0x1c] sm:$0xf]
        %v1774 = vld [vmem:[%s603 + $0x20] sm:$0xf]
        %v1775 = vld [vmem:[%s603 + $0x24] sm:$0xf]
        %v1776 = vld [vmem:[%s603 + $0x28] sm:$0xf]
        %v1777 = vld [vmem:[%s603 + $0x2c] sm:$0xf]
        %v1778 = vld [vmem:[%s603 + $0x30] sm:$0xf]
        %v1779 = vld [vmem:[%s603 + $0x34] sm:$0xf]
        %v1780 = vld [vmem:[%s603 + $0x38] sm:$0xf]
        %v1781 = vld [vmem:[%s603 + $0x3c] sm:$0xf]
        %v1782 = vld [vmem:[%s606] sm:$0x1]
        %v1784 = vlaneseq
        %v1785 = vshrl.u32 %v1784, 7
        %v1786 = vsub.s32 0, %v1785
        %v1787 = vrot.slane %v1782, %v1786
        %v1805 = vunpack.c.l.b16 %v1766
        %v1806 = vunpack.c.l.b16 %v1767
        %v1807 = vunpack.c.l.b16 %v1768
        %v1808 = vunpack.c.l.b16 %v1769
        %v1809 = vunpack.c.l.b16 %v1770
        %v1810 = vunpack.c.l.b16 %v1771
        %v1811 = vunpack.c.l.b16 %v1772
        %v1812 = vunpack.c.l.b16 %v1773
        %v1813 = vunpack.c.l.b16 %v1774
        %v1814 = vunpack.c.l.b16 %v1775
        %v1815 = vunpack.c.l.b16 %v1776
        %v1816 = vunpack.c.l.b16 %v1777
        %v1817 = vunpack.c.l.b16 %v1778
        %v1818 = vunpack.c.l.b16 %v1779
        %v1819 = vunpack.c.l.b16 %v1780
        %v1820 = vunpack.c.l.b16 %v1781
        %v1821 = vpack.c.b16 %v1806, %v1805
        %v1822 = vpack.c.b16 %v1808, %v1807
        %v1823 = vpack.c.b16 %v1810, %v1809
        %v1824 = vpack.c.b16 %v1812, %v1811
        %v1825 = vpack.c.b16 %v1814, %v1813
        %v1826 = vpack.c.b16 %v1816, %v1815
        %v1827 = vpack.c.b16 %v1818, %v1817
        %v1828 = vpack.c.b16 %v1820, %v1819
        %1837 = vmatprep.subr.bf16.mxu0 0
        %1838 = vmatpush1.bf16.msra.mxu0 %v1828
        %1839 = vmatprep.subr.bf16.mxu0 0
        %1840 = vmatpush1.bf16.msra.mxu0 %v1827
        %1841 = vmatprep.subr.bf16.mxu0 0
        %1842 = vmatpush1.bf16.msra.mxu0 %v1826
        %1843 = vmatprep.subr.bf16.mxu0 0
        %1844 = vmatpush1.bf16.msra.mxu0 %v1825
        %1845 = vmatprep.subr.bf16.mxu0 0
        %1846 = vmatpush1.bf16.msra.mxu0 %v1824
        %1847 = vmatprep.subr.bf16.mxu0 0
        %1848 = vmatpush1.bf16.msra.mxu0 %v1823
        %1849 = vmatprep.subr.bf16.mxu0 0
        %1850 = vmatpush1.bf16.msra.mxu0 %v1822
        %1851 = vmatprep.subr.bf16.mxu0 0
        %1852 = vmatpush1.bf16.msra.mxu0 %v1821
        %1853 = vmatprep.subr.bf16.mxu0 0
        %1854 = vmatpush2.bf16.msra.mxu0 0
        %1855 = vmatprep.subr.bf16.mxu0 0
        %1856 = vmatpush2.bf16.msra.mxu0 0
        %1857 = vmatprep.subr.bf16.mxu0 0
        %1858 = vmatpush2.bf16.msra.mxu0 0
        %1859 = vmatprep.subr.bf16.mxu0 0
        %1860 = vmatpush2.bf16.msra.mxu0 0
        %1861 = vmatprep.subr.bf16.mxu0 0
        %1862 = vmatpush2.bf16.msra.mxu0 0
        %1863 = vmatprep.subr.bf16.mxu0 0
        %1864 = vmatpush2.bf16.msra.mxu0 0
        %1865 = vmatprep.subr.bf16.mxu0 0
        %1866 = vmatpush2.bf16.msra.mxu0 0
        %1867 = vmatprep.subr.bf16.mxu0 0
        %1868 = vmatpush2.bf16.msra.mxu0 0
        %1869 = vmatprep.mubr.bf16.mxu0 0
        %1870 = vmatmul.mubr.bf16.gmra.mxu0 %v1764
        %v1871 = vpop.f32.mrf.mxu0
        %v1872 = vadd.f32 %v1787, %v1871
        %v1873 = vpop.f32.mrf.mxu0
        %v1874 = vpop.f32.mrf.mxu0
        %v1875 = vadd.f32 %v1787, %v1874
        %v1876 = vpop.f32.mrf.mxu0
        %1877 = vmatprep.mubr.bf16.mxu0 0
        %1878 = vmatmul.mubr.bf16.gmra.mxu0 %v1765
        %v1879 = vpop.f32.mrf.mxu0
        %v1880 = vadd.f32 %v1787, %v1879
        %v1881 = vpop.f32.mrf.mxu0
        %v1882 = vpop.f32.mrf.mxu0
        %v1883 = vpop.f32.mrf.mxu0
        %1884 = vdwg.mxu0
        %v1885 = vadd.f32 %v1601, %v1872
        %v1886 = vadd.f32 %v1602, %v1875
        %v1887 = vadd.f32 %v1603, %v1880
        %1888 = vst.msk [vmem:[%s554] sm:$0xff] %vm623, %v1885
        %1889 = vst.msk [vmem:[%s554 + $0x8] sm:$0xff] %vm623, %v1886
        %1890 = vst.msk [vmem:[%s554 + $0x10] sm:$0xff] %vm623, %v1887
        %s1891 = sand.u32 %s336, 1
        %s1892 = scalar_lea.sflag [#allocation3], %s1891
        %s1893 = sand.u32 %s336, 1
        %s1894 = smul.addr %s1893, 24
        %s1895 = scalar_lea.vmem [#allocation2], %s1894
        %s1896 = sand.u32 %s364, 1
        %s1897 = scalar_lea.sflag [#allocation5], %s1896
        %s1898 = sand.u32 %s364, 1
        %s1899 = smul.addr %s1898, 96
        %s1900 = scalar_lea.vmem [#allocation4], %s1899
        // Predicated region
        $region69: #{tpu_custom_call.1} parent=63 // pred_check
          %p1901 = pneg %p346
        $region70: #{tpu_custom_call.1} parent=63 // pred_check_branch
          %1903 = sbr.rel (%p1901) target = $region72
        $region71: #{tpu_custom_call.1} parent=63 // pred_region
          %s1905 = ssub.s32 384, 384
          %1906 = vsyncadd %s1892, %s1905
          %s1907 = smul.addr %s34, 3
          %s1908 = smul.addr %s1907, 128
          %s1909 = scalar_lea.hbm %s11, %s1908
          %s1910 = sshll.u32 %s1895, 4
          %s1911 = int_to_ptr.vmem [resolvable:$true] %s1910
          %1916 = dma.vmem_to_hbm [thread:$0]  %s1911, 384, %s1909, %s1892, 128, 128, 8
        $region72: #{tpu_custom_call.1} parent=63 // pred_fallthru
          _
        // Predicated region
        $region73: #{tpu_custom_call.1} parent=63 // pred_check
          %p1917 = pneg %p374
        $region74: #{tpu_custom_call.1} parent=63 // pred_check_branch
          %1919 = sbr.rel (%p1917) target = $region76
        $region75: #{tpu_custom_call.1} parent=63 // pred_region
          %s1921 = ssub.s32 1536, 1536
          %1922 = vsyncadd %s1897, %s1921
          %s1923 = smul.addr %s35, 12
          %s1924 = smul.addr %s34, 24
          %s1925 = sadd.s32 %s1923, %s1924
          %s1926 = smul.addr %s1925, 128
          %s1927 = scalar_lea.hbm %s12, %s1926
          %s1928 = sshll.u32 %s1900, 4
          %s1929 = int_to_ptr.vmem [resolvable:$true] %s1928
          %1934 = dma.vmem_to_hbm [thread:$0]  %s1929, 1536, %s1927, %s1897, 128, 128, 8
        $region76: #{tpu_custom_call.1} parent=63 // pred_fallthru
          _
      $region64: #{tpu_custom_call.1} parent=5 // pred_fallthru
        _
      %p1935 = scmp.le.s32.totalorder 2, %s25
      // Predicated region
      $region77: #{tpu_custom_call.1} parent=5 // pred_check
        %p1936 = pneg %p1935
      $region78: #{tpu_custom_call.1} parent=5 // pred_check_branch
        %1938 = sbr.rel (%p1936) target = $region80
      $region79: #{tpu_custom_call.1} parent=5 // pred_region
        %s1939 = ssub.s32 %s25, 2
        // Predicated region
        $region81: #{tpu_custom_call.1} parent=79 // pred_check
          %p1940 = pneg %p352
        $region82: #{tpu_custom_call.1} parent=79 // pred_check_branch
          %1942 = sbr.rel (%p1940) target = $region84
        $region83: #{tpu_custom_call.1} parent=79 // pred_region
          %s1943 = sand.u32 %s337, 1
          %s1944 = scalar_lea.sflag [#allocation3], %s1943
          %s1945 = sand.u32 %s337, 1
          %s1946 = smul.addr %s1945, 24
          %s1947 = scalar_lea.vmem [#allocation2], %s1946
          %1948 = dma.done %s1944, 384
        $region84: #{tpu_custom_call.1} parent=79 // pred_fallthru
          _
        // Predicated region
        $region85: #{tpu_custom_call.1} parent=79 // pred_check
          %p1949 = pneg %p380
        $region86: #{tpu_custom_call.1} parent=79 // pred_check_branch
          %1951 = sbr.rel (%p1949) target = $region88
        $region87: #{tpu_custom_call.1} parent=79 // pred_region
          %s1952 = sand.u32 %s365, 1
          %s1953 = scalar_lea.sflag [#allocation5], %s1952
          %s1954 = sand.u32 %s365, 1
          %s1955 = smul.addr %s1954, 96
          %s1956 = scalar_lea.vmem [#allocation4], %s1955
          %1957 = dma.done %s1953, 1536
        $region88: #{tpu_custom_call.1} parent=79 // pred_fallthru
          _
      $region80: #{tpu_custom_call.1} parent=5 // pred_fallthru
        _
    $region6: #{tpu_custom_call.1} parent=1 // loop_footer
      %s29 = sadd.s32 1, %s25
    $region7: #{tpu_custom_call.1} parent=1 // loop_footer_branch
      %24 = sbr.rel target = $region3
    $region8: #{tpu_custom_call.1} parent=1 // loop_exit
      _
    %1958 = vsyncpa [#allocation3], 1
    %s1959 = scalar_lea.sflag [#allocation3], 1
    %1960 = vsyncpa %s1959, 1
    %1961 = vsyncpa [#allocation5], 1
    %s1962 = scalar_lea.sflag [#allocation5], 1
    %1963 = vsyncpa %s1962, 1

</llo_original>
